<compile_context>
chip_gen: v5e
topology: v5e:2x2
jax: 0.10.0
libtpu: 0.0.40
codegen_flags: <defaults>
</compile_context>

<pallas_src>
import numpy as np
import jax
import jax.numpy as jnp
from jax.experimental import pallas as pl
from jax.experimental.pallas import tpu as pltpu

# ----- small config implied by the module (params.*) -----
VOCAB = 32        # params.vocab_size
EMB_DIM = 16      # params.embedding_dim
HIDDEN = 32       # params.lstm_hidden_dim
TAG_LEN = 4       # params.tag_len
PAD_IDX = 0       # params.padding_idx
BATCH = 2
SEQ = 8

# Python float (becomes a jaxpr literal; a jnp scalar here would be a captured constant).
# Stands in for masked_fill(-inf): exp() underflows to exactly 0 either way.
# NOTE: an all-PAD row would give a uniform (not NaN) attention -> logits = b_fc; this
# silently diverges from PyTorch's -inf softmax / pack_padded_sequence (not hit in tests).
NEG_INF = -1e30


def net_lstm_kernel(x_ref, m_ref, lstm_ref, head_ref, out_ref):
    E2 = 2 * EMB_DIM
    H = HIDDEN
    H2 = 2 * H
    A = TAG_LEN
    B, T, _ = m_ref.shape

    xcat = x_ref[...]                                # (B, T, 2E)
    mcat = m_ref[...]                                # (B, T, 2H)
    wx = lstm_ref[0:E2, :]                           # (2E, 8H)
    whh = lstm_ref[E2:E2 + H2, :]                    # (2H, 8H) block-diagonal
    bias = lstm_ref[E2 + H2:E2 + H2 + 1, :]          # (1, 8H)

    # (1) hoisted input projection: ONE (B*T,2E)x(2E,8H) matmul + bias covers both
    #     directions and all gates; entirely off the recurrent critical path.
    xg = (jnp.dot(xcat.reshape(B * T, E2), wx, preferred_element_type=jnp.float32)
          + bias).reshape(B, T, 8 * H)

    # (2) fused fwd+bwd recurrence: h/c = [h_f | h_b] (B,2H); step k handles time k for
    #     the forward half and time T-1-k for the backward half (bwd half of xg/mcat was
    #     built from time-reversed inputs).  8 serial steps instead of 16.
    h = jnp.zeros((B, H2), jnp.float32)
    c = jnp.zeros((B, H2), jnp.float32)
    outs = []
    for k in range(T):                               # static unroll (T small)
        g = xg[:, k, :] + jnp.dot(h, whh, preferred_element_type=jnp.float32)  # (B, 8H)
        sig = jax.nn.sigmoid(g[:, :6 * H])           # one contiguous [i|f|o] slab (both dirs)
        g_t = jnp.tanh(g[:, 6 * H:])                 # one contiguous [g] slab
        i_c = sig[:, 0:H2]
        f_c = sig[:, H2:2 * H2]
        o_c = sig[:, 2 * H2:3 * H2]
        c_new = f_c * c + i_c * g_t
        h_new = o_c * jnp.tanh(c_new)
        m_k = mcat[:, k, :]                          # pack_padded semantics:
        c = jnp.where(m_k > 0, c_new, c)             #   padded steps keep state,
        h = jnp.where(m_k > 0, h_new, h)
        outs.append(h * m_k)                         #   padded outputs are zero

    # (3) reassemble (B,T,2H) features in registers (no scratch / masked partial stores):
    #     time t = fwd half of step t, bwd half of step T-1-t.
    rows = [jnp.concatenate([outs[t][:, :H], outs[T - 1 - t][:, H:]], axis=-1)[:, None, :]
            for t in range(T)]
    feats = jnp.concatenate(rows, axis=1)            # (B, T, 2H)

    w_head = head_ref[0:H2, :]                       # (2H, A+1): [w_att | w_fc]
    b_fc = head_ref[H2:H2 + 1, A:A + 1]              # (1, 1)

    # (4) ONE head matmul produces BOTH the attention scores (cols 0:A) and the per-token
    #     fc value v_t = feats_t @ w_fc (col A).  Because fc is linear,
    #     fc(att @ feats) = att @ (feats @ w_fc) + b_fc, so the old per-tag context loop
    #     (A extra (B,T,2H) VPU reductions + A tiny matmuls) collapses into one (B,T,A)
    #     weighted time-sum.
    sc = jnp.dot(feats.reshape(B * T, H2), w_head,
                 preferred_element_type=jnp.float32).reshape(B, T, A + 1)
    att = sc[:, :, 0:A]                              # (B, T, A)
    fv = sc[:, :, A:A + 1]                           # (B, T, 1)

    # masked softmax over time axis=1 (scores stay in (B,T,A) layout; no transpose).
    att = att + (mcat[:, :, 0:1] - 1.0) * 1e30       # additive mask: 0 (real) / -1e30 (PAD)
    att = att - jnp.max(att, axis=1, keepdims=True)
    p = jnp.exp(att)
    p = p * pl.reciprocal(jnp.sum(p, axis=1, keepdims=True), approx=True)   # (B, T, A)

    logits = jnp.sum(p * fv, axis=1) + b_fc          # (B, A)

    # log_softmax over the tag axis (dim=1 of the (B, tag_len) result)
    z = logits - jnp.max(logits, axis=1, keepdims=True)
    out_ref[...] = z - jnp.log(jnp.sum(jnp.exp(z), axis=1, keepdims=True))


def _pack_dir(w, direction):
    """w: (R, 4H) in PyTorch gate order [i, f, g, o] for one direction ->
    (R, 8H) in the fused column layout [i_f,i_b,f_f,f_b,o_f,o_b,g_f,g_b];
    the other direction's columns are zero (gives a block-diagonal W_hh)."""
    H = HIDDEN
    R = w.shape[0]
    i, f, g, o = w[:, 0:H], w[:, H:2 * H], w[:, 2 * H:3 * H], w[:, 3 * H:4 * H]
    z = jnp.zeros((R, H), w.dtype)
    blocks = [i, z, f, z, o, z, g, z] if direction == 0 else [z, i, z, f, z, o, z, g]
    return jnp.concatenate(blocks, axis=1)


@jax.jit
def net_lstm_forward(s, P):
    B, T = s.shape
    H = HIDDEN
    # Glue: embedding gather + mask build; nn.Dropout(0.5) is identity in inference mode;
    # emb[:, :lengths.max()] truncation is a no-op (row 0 has full length).
    emb = jnp.take(P['embedding'], s, axis=0).astype(jnp.float32)      # (B, T, E)
    mask = (s != PAD_IDX).astype(jnp.float32)                          # (B, T)
    xcat = jnp.concatenate([emb, emb[:, ::-1, :]], axis=-1)            # (B, T, 2E)
    mcat = jnp.concatenate(
        [jnp.broadcast_to(mask[:, :, None], (B, T, H)),
         jnp.broadcast_to(mask[:, ::-1, None], (B, T, H))], axis=-1)   # (B, T, 2H)

    # Pack the 9 weight/bias arrays into 2 pre-concatenated arrays (fewer DMA descriptors).
    wx = jnp.concatenate([_pack_dir(P['w_ih_f'], 0), _pack_dir(P['w_ih_b'], 1)], axis=0)
    whh = jnp.concatenate([_pack_dir(P['w_hh_f'], 0), _pack_dir(P['w_hh_b'], 1)], axis=0)
    bias = _pack_dir(P['b_f'], 0) + _pack_dir(P['b_b'], 1)
    w_lstm = jnp.concatenate([wx, whh, bias], axis=0)                  # (2E+2H+1, 8H)

    head = jnp.zeros((2 * H + 1, TAG_LEN + 1), jnp.float32)
    head = head.at[0:2 * H, 0:TAG_LEN].set(P['w_att'])
    head = head.at[0:2 * H, TAG_LEN:TAG_LEN + 1].set(P['w_fc'].T)
    head = head.at[2 * H, TAG_LEN].set(P['b_fc'][0, 0])                # (2H+1, A+1)

    # TODO(synk): for production batches >> 2, add a "parallel" grid over batch so v7x's
    # second TensorCore is used; pointless (pure overhead) at B=2.
    return pl.pallas_call(
        net_lstm_kernel,
        out_shape=jax.ShapeDtypeStruct((B, TAG_LEN), jnp.float32),
        in_specs=[pl.BlockSpec(memory_space=pltpu.MemorySpace.VMEM)] * 4,
        out_specs=pl.BlockSpec(memory_space=pltpu.MemorySpace.VMEM),
        cost_estimate=pl.CostEstimate(flops=820_000, transcendentals=5_500,
                                      bytes_accessed=120_000),
    )(xcat, mcat, w_lstm, head)


def reference_forward(s, P):
    """Pure-JAX reference of the same math (PyTorch semantics; for validation only)."""
    emb = P['embedding'][s]
    mask = (s != PAD_IDX).astype(jnp.float32)
    B, T = s.shape
    H = HIDDEN

    def run_dir(w_ih, w_hh, b, reverse):
        h = jnp.zeros((B, H)); c = jnp.zeros((B, H))
        outs = [None] * T
        order = range(T - 1, -1, -1) if reverse else range(T)
        for t in order:
            x_t = emb[:, t, :]; m_t = mask[:, t:t + 1]
            g = x_t @ w_ih + h @ w_hh + b
            i_g = jax.nn.sigmoid(g[:, :H]); f_g = jax.nn.sigmoid(g[:, H:2 * H])
            g_g = jnp.tanh(g[:, 2 * H:3 * H]); o_g = jax.nn.sigmoid(g[:, 3 * H:])
            c_new = f_g * c + i_g * g_g
            h_new = o_g * jnp.tanh(c_new)
            h = jnp.where(m_t > 0, h_new, h); c = jnp.where(m_t > 0, c_new, c)
            outs[t] = h * m_t
        return jnp.stack(outs, axis=1)

    feats = jnp.concatenate([run_dir(P['w_ih_f'], P['w_hh_f'], P['b_f'], False),
                             run_dir(P['w_ih_b'], P['w_hh_b'], P['b_b'], True)], -1)
    att = jnp.einsum('btd,da->bat', feats, P['w_att'])
    att = jnp.where(mask[:, None, :] > 0, att, NEG_INF)
    att = jax.nn.softmax(att, axis=-1)
    ctx = att @ feats
    logits = jnp.sum(ctx * P['w_fc'][None, :, :], axis=-1) + P['b_fc']
    return jax.nn.log_softmax(logits, axis=1)


def init_params(key):
    # Deterministic synthetic init (shapes match the PyTorch module; weights pre-transposed
    # so contraction is on the last axis, gate order [i, f, g, o]).  b_ih + b_hh pre-summed.
    keys = jax.random.split(key, 11)
    k = 1.0 / np.sqrt(HIDDEN)

    def u(kk, shape):
        return jax.random.uniform(kk, shape, jnp.float32, -k, k)

    return dict(
        embedding=jax.random.normal(keys[0], (VOCAB, EMB_DIM), jnp.float32),
        w_ih_f=u(keys[1], (EMB_DIM, 4 * HIDDEN)),
        w_hh_f=u(keys[2], (HIDDEN, 4 * HIDDEN)),
        b_f=u(keys[3], (1, 4 * HIDDEN)) + u(keys[4], (1, 4 * HIDDEN)),
        w_ih_b=u(keys[5], (EMB_DIM, 4 * HIDDEN)),
        w_hh_b=u(keys[6], (HIDDEN, 4 * HIDDEN)),
        b_b=u(keys[7], (1, 4 * HIDDEN)) + u(keys[8], (1, 4 * HIDDEN)),
        w_att=u(keys[9], (2 * HIDDEN, TAG_LEN)),
        w_fc=u(keys[10], (1, 2 * HIDDEN)),
        b_fc=jnp.zeros((1, 1), jnp.float32),
    )


if __name__ == "__main__":
    key = jax.random.PRNGKey(0)
    pkey, skey = jax.random.split(key)
    P = init_params(pkey)

    # Token ids with trailing PAD; row 0 has full length so lengths.max() == SEQ and
    # the in-forward truncation `emb[:, :lengths.max()]` is a no-op.
    tokens = jax.random.randint(skey, (BATCH, SEQ), 1, VOCAB, dtype=jnp.int32)
    lengths = jnp.array([SEQ, 5], dtype=jnp.int32)
    pos = jnp.arange(SEQ)[None, :]
    s = jnp.where(pos < lengths[:, None], tokens, PAD_IDX).astype(jnp.int32)

    out = jax.block_until_ready(net_lstm_forward(s, P))

    ref = reference_forward(s, P)
    assert out.shape == (BATCH, TAG_LEN)
    assert bool(jnp.all(jnp.isfinite(out)))
    np.testing.assert_allclose(np.asarray(out), np.asarray(ref), atol=2e-2, rtol=2e-2)
    print("KERNEL_OK")
</pallas_src>

<mosaic_0001>
module attributes {stable_mosaic.version = 11 : i64} {
  func.func @net_lstm_kernel(%arg0: memref<2x8x32xf32, #tpu.memory_space<vmem>>, %arg1: memref<2x8x64xf32, #tpu.memory_space<vmem>>, %arg2: memref<97x256xf32, #tpu.memory_space<vmem>>, %arg3: memref<65x5xf32, #tpu.memory_space<vmem>>, %arg4: memref<2x4xf32, #tpu.memory_space<vmem>>) attributes {dimension_semantics = [], scalar_prefetch = 0 : i64, scratch_operands = 0 : i64, tpu.core_type = #tpu.core_type<tc>} {
    %c0 = arith.constant 0 : index
    %c0_0 = arith.constant 0 : index
    %c0_1 = arith.constant 0 : index
    %0 = vector.load %arg0[%c0, %c0_0, %c0_1] : memref<2x8x32xf32, #tpu.memory_space<vmem>>, vector<2x8x32xf32>
    %c0_2 = arith.constant 0 : index
    %c0_3 = arith.constant 0 : index
    %c0_4 = arith.constant 0 : index
    %1 = vector.load %arg1[%c0_2, %c0_3, %c0_4] : memref<2x8x64xf32, #tpu.memory_space<vmem>>, vector<2x8x64xf32>
    %c0_5 = arith.constant 0 : index
    %c0_6 = arith.constant 0 : index
    %2 = vector.load %arg2[%c0_5, %c0_6] : memref<97x256xf32, #tpu.memory_space<vmem>>, vector<32x256xf32>
    %c32 = arith.constant 32 : index
    %c0_7 = arith.constant 0 : index
    %3 = vector.load %arg2[%c32, %c0_7] : memref<97x256xf32, #tpu.memory_space<vmem>>, vector<64x256xf32>
    %c96 = arith.constant 96 : index
    %c0_8 = arith.constant 0 : index
    %4 = vector.load %arg2[%c96, %c0_8] : memref<97x256xf32, #tpu.memory_space<vmem>>, vector<1x256xf32>
    %5 = vector.shape_cast %0 : vector<2x8x32xf32> to vector<16x32xf32>
    %cst = arith.constant dense<0.000000e+00> : vector<16x256xf32>
    %6 = tpu.matmul %5, %2, %cst {dimension_numbers = #tpu.dot_dimension_numbers<[1], [0], [0], [1], [0, 0, 1, 1], [], []>} : vector<16x32xf32>, vector<32x256xf32>, vector<16x256xf32> -> vector<16x256xf32>
    %7 = vector.broadcast %4 : vector<1x256xf32> to vector<16x256xf32>
    %8 = arith.addf %6, %7 : vector<16x256xf32>
    %9 = vector.shape_cast %8 : vector<16x256xf32> to vector<2x8x256xf32>
    %cst_9 = arith.constant 0.000000e+00 : f32
    %10 = vector.broadcast %cst_9 : f32 to vector<2x64xf32>
    %cst_10 = arith.constant 0.000000e+00 : f32
    %11 = vector.broadcast %cst_10 : f32 to vector<2x64xf32>
    %12 = vector.extract_strided_slice %9 {offsets = [0, 0, 0], sizes = [2, 1, 256], strides = [1, 1, 1]} : vector<2x8x256xf32> to vector<2x1x256xf32>
    %13 = vector.shape_cast %12 : vector<2x1x256xf32> to vector<2x256xf32>
    %cst_11 = arith.constant dense<0.000000e+00> : vector<2x256xf32>
    %14 = tpu.matmul %10, %3, %cst_11 {dimension_numbers = #tpu.dot_dimension_numbers<[1], [0], [0], [1], [0, 0, 1, 1], [], []>} : vector<2x64xf32>, vector<64x256xf32>, vector<2x256xf32> -> vector<2x256xf32>
    %15 = arith.addf %13, %14 : vector<2x256xf32>
    %16 = vector.extract_strided_slice %15 {offsets = [0, 0], sizes = [2, 192], strides = [1, 1]} : vector<2x256xf32> to vector<2x192xf32>
    %17 = arith.negf %16 : vector<2x192xf32>
    %18 = math.exp %17 : vector<2x192xf32>
    %cst_12 = arith.constant 1.000000e+00 : f32
    %19 = vector.broadcast %cst_12 : f32 to vector<2x192xf32>
    %20 = arith.addf %19, %18 : vector<2x192xf32>
    %21 = arith.divf %19, %20 : vector<2x192xf32>
    %22 = vector.extract_strided_slice %15 {offsets = [0, 192], sizes = [2, 64], strides = [1, 1]} : vector<2x256xf32> to vector<2x64xf32>
    %23 = math.tanh %22 : vector<2x64xf32>
    %24 = vector.extract_strided_slice %21 {offsets = [0, 0], sizes = [2, 64], strides = [1, 1]} : vector<2x192xf32> to vector<2x64xf32>
    %25 = vector.extract_strided_slice %21 {offsets = [0, 64], sizes = [2, 64], strides = [1, 1]} : vector<2x192xf32> to vector<2x64xf32>
    %26 = vector.extract_strided_slice %21 {offsets = [0, 128], sizes = [2, 64], strides = [1, 1]} : vector<2x192xf32> to vector<2x64xf32>
    %27 = arith.mulf %25, %11 : vector<2x64xf32>
    %28 = arith.mulf %24, %23 : vector<2x64xf32>
    %29 = arith.addf %27, %28 : vector<2x64xf32>
    %30 = math.tanh %29 : vector<2x64xf32>
    %31 = arith.mulf %26, %30 : vector<2x64xf32>
    %32 = vector.extract_strided_slice %1 {offsets = [0, 0, 0], sizes = [2, 1, 64], strides = [1, 1, 1]} : vector<2x8x64xf32> to vector<2x1x64xf32>
    %33 = vector.shape_cast %32 : vector<2x1x64xf32> to vector<2x64xf32>
    %cst_13 = arith.constant 0.000000e+00 : f32
    %34 = vector.broadcast %cst_13 : f32 to vector<2x64xf32>
    %35 = arith.cmpf ogt, %33, %34 : vector<2x64xf32>
    %36 = arith.select %35, %29, %11 : vector<2x64xi1>, vector<2x64xf32>
    %cst_14 = arith.constant 0.000000e+00 : f32
    %37 = vector.broadcast %cst_14 : f32 to vector<2x64xf32>
    %38 = arith.cmpf ogt, %33, %37 : vector<2x64xf32>
    %39 = arith.select %38, %31, %10 : vector<2x64xi1>, vector<2x64xf32>
    %40 = arith.mulf %39, %33 : vector<2x64xf32>
    %41 = vector.extract_strided_slice %9 {offsets = [0, 1, 0], sizes = [2, 1, 256], strides = [1, 1, 1]} : vector<2x8x256xf32> to vector<2x1x256xf32>
    %42 = vector.shape_cast %41 : vector<2x1x256xf32> to vector<2x256xf32>
    %cst_15 = arith.constant dense<0.000000e+00> : vector<2x256xf32>
    %43 = tpu.matmul %39, %3, %cst_15 {dimension_numbers = #tpu.dot_dimension_numbers<[1], [0], [0], [1], [0, 0, 1, 1], [], []>} : vector<2x64xf32>, vector<64x256xf32>, vector<2x256xf32> -> vector<2x256xf32>
    %44 = arith.addf %42, %43 : vector<2x256xf32>
    %45 = vector.extract_strided_slice %44 {offsets = [0, 0], sizes = [2, 192], strides = [1, 1]} : vector<2x256xf32> to vector<2x192xf32>
    %46 = arith.negf %45 : vector<2x192xf32>
    %47 = math.exp %46 : vector<2x192xf32>
    %cst_16 = arith.constant 1.000000e+00 : f32
    %48 = vector.broadcast %cst_16 : f32 to vector<2x192xf32>
    %49 = arith.addf %48, %47 : vector<2x192xf32>
    %50 = arith.divf %48, %49 : vector<2x192xf32>
    %51 = vector.extract_strided_slice %44 {offsets = [0, 192], sizes = [2, 64], strides = [1, 1]} : vector<2x256xf32> to vector<2x64xf32>
    %52 = math.tanh %51 : vector<2x64xf32>
    %53 = vector.extract_strided_slice %50 {offsets = [0, 0], sizes = [2, 64], strides = [1, 1]} : vector<2x192xf32> to vector<2x64xf32>
    %54 = vector.extract_strided_slice %50 {offsets = [0, 64], sizes = [2, 64], strides = [1, 1]} : vector<2x192xf32> to vector<2x64xf32>
    %55 = vector.extract_strided_slice %50 {offsets = [0, 128], sizes = [2, 64], strides = [1, 1]} : vector<2x192xf32> to vector<2x64xf32>
    %56 = arith.mulf %54, %36 : vector<2x64xf32>
    %57 = arith.mulf %53, %52 : vector<2x64xf32>
    %58 = arith.addf %56, %57 : vector<2x64xf32>
    %59 = math.tanh %58 : vector<2x64xf32>
    %60 = arith.mulf %55, %59 : vector<2x64xf32>
    %61 = vector.extract_strided_slice %1 {offsets = [0, 1, 0], sizes = [2, 1, 64], strides = [1, 1, 1]} : vector<2x8x64xf32> to vector<2x1x64xf32>
    %62 = vector.shape_cast %61 : vector<2x1x64xf32> to vector<2x64xf32>
    %cst_17 = arith.constant 0.000000e+00 : f32
    %63 = vector.broadcast %cst_17 : f32 to vector<2x64xf32>
    %64 = arith.cmpf ogt, %62, %63 : vector<2x64xf32>
    %65 = arith.select %64, %58, %36 : vector<2x64xi1>, vector<2x64xf32>
    %cst_18 = arith.constant 0.000000e+00 : f32
    %66 = vector.broadcast %cst_18 : f32 to vector<2x64xf32>
    %67 = arith.cmpf ogt, %62, %66 : vector<2x64xf32>
    %68 = arith.select %67, %60, %39 : vector<2x64xi1>, vector<2x64xf32>
    %69 = arith.mulf %68, %62 : vector<2x64xf32>
    %70 = vector.extract_strided_slice %9 {offsets = [0, 2, 0], sizes = [2, 1, 256], strides = [1, 1, 1]} : vector<2x8x256xf32> to vector<2x1x256xf32>
    %71 = vector.shape_cast %70 : vector<2x1x256xf32> to vector<2x256xf32>
    %cst_19 = arith.constant dense<0.000000e+00> : vector<2x256xf32>
    %72 = tpu.matmul %68, %3, %cst_19 {dimension_numbers = #tpu.dot_dimension_numbers<[1], [0], [0], [1], [0, 0, 1, 1], [], []>} : vector<2x64xf32>, vector<64x256xf32>, vector<2x256xf32> -> vector<2x256xf32>
    %73 = arith.addf %71, %72 : vector<2x256xf32>
    %74 = vector.extract_strided_slice %73 {offsets = [0, 0], sizes = [2, 192], strides = [1, 1]} : vector<2x256xf32> to vector<2x192xf32>
    %75 = arith.negf %74 : vector<2x192xf32>
    %76 = math.exp %75 : vector<2x192xf32>
    %cst_20 = arith.constant 1.000000e+00 : f32
    %77 = vector.broadcast %cst_20 : f32 to vector<2x192xf32>
    %78 = arith.addf %77, %76 : vector<2x192xf32>
    %79 = arith.divf %77, %78 : vector<2x192xf32>
    %80 = vector.extract_strided_slice %73 {offsets = [0, 192], sizes = [2, 64], strides = [1, 1]} : vector<2x256xf32> to vector<2x64xf32>
    %81 = math.tanh %80 : vector<2x64xf32>
    %82 = vector.extract_strided_slice %79 {offsets = [0, 0], sizes = [2, 64], strides = [1, 1]} : vector<2x192xf32> to vector<2x64xf32>
    %83 = vector.extract_strided_slice %79 {offsets = [0, 64], sizes = [2, 64], strides = [1, 1]} : vector<2x192xf32> to vector<2x64xf32>
    %84 = vector.extract_strided_slice %79 {offsets = [0, 128], sizes = [2, 64], strides = [1, 1]} : vector<2x192xf32> to vector<2x64xf32>
    %85 = arith.mulf %83, %65 : vector<2x64xf32>
    %86 = arith.mulf %82, %81 : vector<2x64xf32>
    %87 = arith.addf %85, %86 : vector<2x64xf32>
    %88 = math.tanh %87 : vector<2x64xf32>
    %89 = arith.mulf %84, %88 : vector<2x64xf32>
    %90 = vector.extract_strided_slice %1 {offsets = [0, 2, 0], sizes = [2, 1, 64], strides = [1, 1, 1]} : vector<2x8x64xf32> to vector<2x1x64xf32>
    %91 = vector.shape_cast %90 : vector<2x1x64xf32> to vector<2x64xf32>
    %cst_21 = arith.constant 0.000000e+00 : f32
    %92 = vector.broadcast %cst_21 : f32 to vector<2x64xf32>
    %93 = arith.cmpf ogt, %91, %92 : vector<2x64xf32>
    %94 = arith.select %93, %87, %65 : vector<2x64xi1>, vector<2x64xf32>
    %cst_22 = arith.constant 0.000000e+00 : f32
    %95 = vector.broadcast %cst_22 : f32 to vector<2x64xf32>
    %96 = arith.cmpf ogt, %91, %95 : vector<2x64xf32>
    %97 = arith.select %96, %89, %68 : vector<2x64xi1>, vector<2x64xf32>
    %98 = arith.mulf %97, %91 : vector<2x64xf32>
    %99 = vector.extract_strided_slice %9 {offsets = [0, 3, 0], sizes = [2, 1, 256], strides = [1, 1, 1]} : vector<2x8x256xf32> to vector<2x1x256xf32>
    %100 = vector.shape_cast %99 : vector<2x1x256xf32> to vector<2x256xf32>
    %cst_23 = arith.constant dense<0.000000e+00> : vector<2x256xf32>
    %101 = tpu.matmul %97, %3, %cst_23 {dimension_numbers = #tpu.dot_dimension_numbers<[1], [0], [0], [1], [0, 0, 1, 1], [], []>} : vector<2x64xf32>, vector<64x256xf32>, vector<2x256xf32> -> vector<2x256xf32>
    %102 = arith.addf %100, %101 : vector<2x256xf32>
    %103 = vector.extract_strided_slice %102 {offsets = [0, 0], sizes = [2, 192], strides = [1, 1]} : vector<2x256xf32> to vector<2x192xf32>
    %104 = arith.negf %103 : vector<2x192xf32>
    %105 = math.exp %104 : vector<2x192xf32>
    %cst_24 = arith.constant 1.000000e+00 : f32
    %106 = vector.broadcast %cst_24 : f32 to vector<2x192xf32>
    %107 = arith.addf %106, %105 : vector<2x192xf32>
    %108 = arith.divf %106, %107 : vector<2x192xf32>
    %109 = vector.extract_strided_slice %102 {offsets = [0, 192], sizes = [2, 64], strides = [1, 1]} : vector<2x256xf32> to vector<2x64xf32>
    %110 = math.tanh %109 : vector<2x64xf32>
    %111 = vector.extract_strided_slice %108 {offsets = [0, 0], sizes = [2, 64], strides = [1, 1]} : vector<2x192xf32> to vector<2x64xf32>
    %112 = vector.extract_strided_slice %108 {offsets = [0, 64], sizes = [2, 64], strides = [1, 1]} : vector<2x192xf32> to vector<2x64xf32>
    %113 = vector.extract_strided_slice %108 {offsets = [0, 128], sizes = [2, 64], strides = [1, 1]} : vector<2x192xf32> to vector<2x64xf32>
    %114 = arith.mulf %112, %94 : vector<2x64xf32>
    %115 = arith.mulf %111, %110 : vector<2x64xf32>
    %116 = arith.addf %114, %115 : vector<2x64xf32>
    %117 = math.tanh %116 : vector<2x64xf32>
    %118 = arith.mulf %113, %117 : vector<2x64xf32>
    %119 = vector.extract_strided_slice %1 {offsets = [0, 3, 0], sizes = [2, 1, 64], strides = [1, 1, 1]} : vector<2x8x64xf32> to vector<2x1x64xf32>
    %120 = vector.shape_cast %119 : vector<2x1x64xf32> to vector<2x64xf32>
    %cst_25 = arith.constant 0.000000e+00 : f32
    %121 = vector.broadcast %cst_25 : f32 to vector<2x64xf32>
    %122 = arith.cmpf ogt, %120, %121 : vector<2x64xf32>
    %123 = arith.select %122, %116, %94 : vector<2x64xi1>, vector<2x64xf32>
    %cst_26 = arith.constant 0.000000e+00 : f32
    %124 = vector.broadcast %cst_26 : f32 to vector<2x64xf32>
    %125 = arith.cmpf ogt, %120, %124 : vector<2x64xf32>
    %126 = arith.select %125, %118, %97 : vector<2x64xi1>, vector<2x64xf32>
    %127 = arith.mulf %126, %120 : vector<2x64xf32>
    %128 = vector.extract_strided_slice %9 {offsets = [0, 4, 0], sizes = [2, 1, 256], strides = [1, 1, 1]} : vector<2x8x256xf32> to vector<2x1x256xf32>
    %129 = vector.shape_cast %128 : vector<2x1x256xf32> to vector<2x256xf32>
    %cst_27 = arith.constant dense<0.000000e+00> : vector<2x256xf32>
    %130 = tpu.matmul %126, %3, %cst_27 {dimension_numbers = #tpu.dot_dimension_numbers<[1], [0], [0], [1], [0, 0, 1, 1], [], []>} : vector<2x64xf32>, vector<64x256xf32>, vector<2x256xf32> -> vector<2x256xf32>
    %131 = arith.addf %129, %130 : vector<2x256xf32>
    %132 = vector.extract_strided_slice %131 {offsets = [0, 0], sizes = [2, 192], strides = [1, 1]} : vector<2x256xf32> to vector<2x192xf32>
    %133 = arith.negf %132 : vector<2x192xf32>
    %134 = math.exp %133 : vector<2x192xf32>
    %cst_28 = arith.constant 1.000000e+00 : f32
    %135 = vector.broadcast %cst_28 : f32 to vector<2x192xf32>
    %136 = arith.addf %135, %134 : vector<2x192xf32>
    %137 = arith.divf %135, %136 : vector<2x192xf32>
    %138 = vector.extract_strided_slice %131 {offsets = [0, 192], sizes = [2, 64], strides = [1, 1]} : vector<2x256xf32> to vector<2x64xf32>
    %139 = math.tanh %138 : vector<2x64xf32>
    %140 = vector.extract_strided_slice %137 {offsets = [0, 0], sizes = [2, 64], strides = [1, 1]} : vector<2x192xf32> to vector<2x64xf32>
    %141 = vector.extract_strided_slice %137 {offsets = [0, 64], sizes = [2, 64], strides = [1, 1]} : vector<2x192xf32> to vector<2x64xf32>
    %142 = vector.extract_strided_slice %137 {offsets = [0, 128], sizes = [2, 64], strides = [1, 1]} : vector<2x192xf32> to vector<2x64xf32>
    %143 = arith.mulf %141, %123 : vector<2x64xf32>
    %144 = arith.mulf %140, %139 : vector<2x64xf32>
    %145 = arith.addf %143, %144 : vector<2x64xf32>
    %146 = math.tanh %145 : vector<2x64xf32>
    %147 = arith.mulf %142, %146 : vector<2x64xf32>
    %148 = vector.extract_strided_slice %1 {offsets = [0, 4, 0], sizes = [2, 1, 64], strides = [1, 1, 1]} : vector<2x8x64xf32> to vector<2x1x64xf32>
    %149 = vector.shape_cast %148 : vector<2x1x64xf32> to vector<2x64xf32>
    %cst_29 = arith.constant 0.000000e+00 : f32
    %150 = vector.broadcast %cst_29 : f32 to vector<2x64xf32>
    %151 = arith.cmpf ogt, %149, %150 : vector<2x64xf32>
    %152 = arith.select %151, %145, %123 : vector<2x64xi1>, vector<2x64xf32>
    %cst_30 = arith.constant 0.000000e+00 : f32
    %153 = vector.broadcast %cst_30 : f32 to vector<2x64xf32>
    %154 = arith.cmpf ogt, %149, %153 : vector<2x64xf32>
    %155 = arith.select %154, %147, %126 : vector<2x64xi1>, vector<2x64xf32>
    %156 = arith.mulf %155, %149 : vector<2x64xf32>
    %157 = vector.extract_strided_slice %9 {offsets = [0, 5, 0], sizes = [2, 1, 256], strides = [1, 1, 1]} : vector<2x8x256xf32> to vector<2x1x256xf32>
    %158 = vector.shape_cast %157 : vector<2x1x256xf32> to vector<2x256xf32>
    %cst_31 = arith.constant dense<0.000000e+00> : vector<2x256xf32>
    %159 = tpu.matmul %155, %3, %cst_31 {dimension_numbers = #tpu.dot_dimension_numbers<[1], [0], [0], [1], [0, 0, 1, 1], [], []>} : vector<2x64xf32>, vector<64x256xf32>, vector<2x256xf32> -> vector<2x256xf32>
    %160 = arith.addf %158, %159 : vector<2x256xf32>
    %161 = vector.extract_strided_slice %160 {offsets = [0, 0], sizes = [2, 192], strides = [1, 1]} : vector<2x256xf32> to vector<2x192xf32>
    %162 = arith.negf %161 : vector<2x192xf32>
    %163 = math.exp %162 : vector<2x192xf32>
    %cst_32 = arith.constant 1.000000e+00 : f32
    %164 = vector.broadcast %cst_32 : f32 to vector<2x192xf32>
    %165 = arith.addf %164, %163 : vector<2x192xf32>
    %166 = arith.divf %164, %165 : vector<2x192xf32>
    %167 = vector.extract_strided_slice %160 {offsets = [0, 192], sizes = [2, 64], strides = [1, 1]} : vector<2x256xf32> to vector<2x64xf32>
    %168 = math.tanh %167 : vector<2x64xf32>
    %169 = vector.extract_strided_slice %166 {offsets = [0, 0], sizes = [2, 64], strides = [1, 1]} : vector<2x192xf32> to vector<2x64xf32>
    %170 = vector.extract_strided_slice %166 {offsets = [0, 64], sizes = [2, 64], strides = [1, 1]} : vector<2x192xf32> to vector<2x64xf32>
    %171 = vector.extract_strided_slice %166 {offsets = [0, 128], sizes = [2, 64], strides = [1, 1]} : vector<2x192xf32> to vector<2x64xf32>
    %172 = arith.mulf %170, %152 : vector<2x64xf32>
    %173 = arith.mulf %169, %168 : vector<2x64xf32>
    %174 = arith.addf %172, %173 : vector<2x64xf32>
    %175 = math.tanh %174 : vector<2x64xf32>
    %176 = arith.mulf %171, %175 : vector<2x64xf32>
    %177 = vector.extract_strided_slice %1 {offsets = [0, 5, 0], sizes = [2, 1, 64], strides = [1, 1, 1]} : vector<2x8x64xf32> to vector<2x1x64xf32>
    %178 = vector.shape_cast %177 : vector<2x1x64xf32> to vector<2x64xf32>
    %cst_33 = arith.constant 0.000000e+00 : f32
    %179 = vector.broadcast %cst_33 : f32 to vector<2x64xf32>
    %180 = arith.cmpf ogt, %178, %179 : vector<2x64xf32>
    %181 = arith.select %180, %174, %152 : vector<2x64xi1>, vector<2x64xf32>
    %cst_34 = arith.constant 0.000000e+00 : f32
    %182 = vector.broadcast %cst_34 : f32 to vector<2x64xf32>
    %183 = arith.cmpf ogt, %178, %182 : vector<2x64xf32>
    %184 = arith.select %183, %176, %155 : vector<2x64xi1>, vector<2x64xf32>
    %185 = arith.mulf %184, %178 : vector<2x64xf32>
    %186 = vector.extract_strided_slice %9 {offsets = [0, 6, 0], sizes = [2, 1, 256], strides = [1, 1, 1]} : vector<2x8x256xf32> to vector<2x1x256xf32>
    %187 = vector.shape_cast %186 : vector<2x1x256xf32> to vector<2x256xf32>
    %cst_35 = arith.constant dense<0.000000e+00> : vector<2x256xf32>
    %188 = tpu.matmul %184, %3, %cst_35 {dimension_numbers = #tpu.dot_dimension_numbers<[1], [0], [0], [1], [0, 0, 1, 1], [], []>} : vector<2x64xf32>, vector<64x256xf32>, vector<2x256xf32> -> vector<2x256xf32>
    %189 = arith.addf %187, %188 : vector<2x256xf32>
    %190 = vector.extract_strided_slice %189 {offsets = [0, 0], sizes = [2, 192], strides = [1, 1]} : vector<2x256xf32> to vector<2x192xf32>
    %191 = arith.negf %190 : vector<2x192xf32>
    %192 = math.exp %191 : vector<2x192xf32>
    %cst_36 = arith.constant 1.000000e+00 : f32
    %193 = vector.broadcast %cst_36 : f32 to vector<2x192xf32>
    %194 = arith.addf %193, %192 : vector<2x192xf32>
    %195 = arith.divf %193, %194 : vector<2x192xf32>
    %196 = vector.extract_strided_slice %189 {offsets = [0, 192], sizes = [2, 64], strides = [1, 1]} : vector<2x256xf32> to vector<2x64xf32>
    %197 = math.tanh %196 : vector<2x64xf32>
    %198 = vector.extract_strided_slice %195 {offsets = [0, 0], sizes = [2, 64], strides = [1, 1]} : vector<2x192xf32> to vector<2x64xf32>
    %199 = vector.extract_strided_slice %195 {offsets = [0, 64], sizes = [2, 64], strides = [1, 1]} : vector<2x192xf32> to vector<2x64xf32>
    %200 = vector.extract_strided_slice %195 {offsets = [0, 128], sizes = [2, 64], strides = [1, 1]} : vector<2x192xf32> to vector<2x64xf32>
    %201 = arith.mulf %199, %181 : vector<2x64xf32>
    %202 = arith.mulf %198, %197 : vector<2x64xf32>
    %203 = arith.addf %201, %202 : vector<2x64xf32>
    %204 = math.tanh %203 : vector<2x64xf32>
    %205 = arith.mulf %200, %204 : vector<2x64xf32>
    %206 = vector.extract_strided_slice %1 {offsets = [0, 6, 0], sizes = [2, 1, 64], strides = [1, 1, 1]} : vector<2x8x64xf32> to vector<2x1x64xf32>
    %207 = vector.shape_cast %206 : vector<2x1x64xf32> to vector<2x64xf32>
    %cst_37 = arith.constant 0.000000e+00 : f32
    %208 = vector.broadcast %cst_37 : f32 to vector<2x64xf32>
    %209 = arith.cmpf ogt, %207, %208 : vector<2x64xf32>
    %210 = arith.select %209, %203, %181 : vector<2x64xi1>, vector<2x64xf32>
    %cst_38 = arith.constant 0.000000e+00 : f32
    %211 = vector.broadcast %cst_38 : f32 to vector<2x64xf32>
    %212 = arith.cmpf ogt, %207, %211 : vector<2x64xf32>
    %213 = arith.select %212, %205, %184 : vector<2x64xi1>, vector<2x64xf32>
    %214 = arith.mulf %213, %207 : vector<2x64xf32>
    %215 = vector.extract_strided_slice %9 {offsets = [0, 7, 0], sizes = [2, 1, 256], strides = [1, 1, 1]} : vector<2x8x256xf32> to vector<2x1x256xf32>
    %216 = vector.shape_cast %215 : vector<2x1x256xf32> to vector<2x256xf32>
    %cst_39 = arith.constant dense<0.000000e+00> : vector<2x256xf32>
    %217 = tpu.matmul %213, %3, %cst_39 {dimension_numbers = #tpu.dot_dimension_numbers<[1], [0], [0], [1], [0, 0, 1, 1], [], []>} : vector<2x64xf32>, vector<64x256xf32>, vector<2x256xf32> -> vector<2x256xf32>
    %218 = arith.addf %216, %217 : vector<2x256xf32>
    %219 = vector.extract_strided_slice %218 {offsets = [0, 0], sizes = [2, 192], strides = [1, 1]} : vector<2x256xf32> to vector<2x192xf32>
    %220 = arith.negf %219 : vector<2x192xf32>
    %221 = math.exp %220 : vector<2x192xf32>
    %cst_40 = arith.constant 1.000000e+00 : f32
    %222 = vector.broadcast %cst_40 : f32 to vector<2x192xf32>
    %223 = arith.addf %222, %221 : vector<2x192xf32>
    %224 = arith.divf %222, %223 : vector<2x192xf32>
    %225 = vector.extract_strided_slice %218 {offsets = [0, 192], sizes = [2, 64], strides = [1, 1]} : vector<2x256xf32> to vector<2x64xf32>
    %226 = math.tanh %225 : vector<2x64xf32>
    %227 = vector.extract_strided_slice %224 {offsets = [0, 0], sizes = [2, 64], strides = [1, 1]} : vector<2x192xf32> to vector<2x64xf32>
    %228 = vector.extract_strided_slice %224 {offsets = [0, 64], sizes = [2, 64], strides = [1, 1]} : vector<2x192xf32> to vector<2x64xf32>
    %229 = vector.extract_strided_slice %224 {offsets = [0, 128], sizes = [2, 64], strides = [1, 1]} : vector<2x192xf32> to vector<2x64xf32>
    %230 = arith.mulf %228, %210 : vector<2x64xf32>
    %231 = arith.mulf %227, %226 : vector<2x64xf32>
    %232 = arith.addf %230, %231 : vector<2x64xf32>
    %233 = math.tanh %232 : vector<2x64xf32>
    %234 = arith.mulf %229, %233 : vector<2x64xf32>
    %235 = vector.extract_strided_slice %1 {offsets = [0, 7, 0], sizes = [2, 1, 64], strides = [1, 1, 1]} : vector<2x8x64xf32> to vector<2x1x64xf32>
    %236 = vector.shape_cast %235 : vector<2x1x64xf32> to vector<2x64xf32>
    %cst_41 = arith.constant 0.000000e+00 : f32
    %237 = vector.broadcast %cst_41 : f32 to vector<2x64xf32>
    %238 = arith.cmpf ogt, %236, %237 : vector<2x64xf32>
    %239 = arith.select %238, %234, %213 : vector<2x64xi1>, vector<2x64xf32>
    %240 = arith.mulf %239, %236 : vector<2x64xf32>
    %241 = vector.extract_strided_slice %40 {offsets = [0, 0], sizes = [2, 32], strides = [1, 1]} : vector<2x64xf32> to vector<2x32xf32>
    %242 = vector.extract_strided_slice %240 {offsets = [0, 32], sizes = [2, 32], strides = [1, 1]} : vector<2x64xf32> to vector<2x32xf32>
    %243 = tpu.concatenate %241, %242 in 1 : vector<2x32xf32>, vector<2x32xf32> -> vector<2x64xf32>
    %244 = vector.shape_cast %243 : vector<2x64xf32> to vector<2x1x64xf32>
    %245 = vector.extract_strided_slice %69 {offsets = [0, 0], sizes = [2, 32], strides = [1, 1]} : vector<2x64xf32> to vector<2x32xf32>
    %246 = vector.extract_strided_slice %214 {offsets = [0, 32], sizes = [2, 32], strides = [1, 1]} : vector<2x64xf32> to vector<2x32xf32>
    %247 = tpu.concatenate %245, %246 in 1 : vector<2x32xf32>, vector<2x32xf32> -> vector<2x64xf32>
    %248 = vector.shape_cast %247 : vector<2x64xf32> to vector<2x1x64xf32>
    %249 = vector.extract_strided_slice %98 {offsets = [0, 0], sizes = [2, 32], strides = [1, 1]} : vector<2x64xf32> to vector<2x32xf32>
    %250 = vector.extract_strided_slice %185 {offsets = [0, 32], sizes = [2, 32], strides = [1, 1]} : vector<2x64xf32> to vector<2x32xf32>
    %251 = tpu.concatenate %249, %250 in 1 : vector<2x32xf32>, vector<2x32xf32> -> vector<2x64xf32>
    %252 = vector.shape_cast %251 : vector<2x64xf32> to vector<2x1x64xf32>
    %253 = vector.extract_strided_slice %127 {offsets = [0, 0], sizes = [2, 32], strides = [1, 1]} : vector<2x64xf32> to vector<2x32xf32>
    %254 = vector.extract_strided_slice %156 {offsets = [0, 32], sizes = [2, 32], strides = [1, 1]} : vector<2x64xf32> to vector<2x32xf32>
    %255 = tpu.concatenate %253, %254 in 1 : vector<2x32xf32>, vector<2x32xf32> -> vector<2x64xf32>
    %256 = vector.shape_cast %255 : vector<2x64xf32> to vector<2x1x64xf32>
    %257 = vector.extract_strided_slice %156 {offsets = [0, 0], sizes = [2, 32], strides = [1, 1]} : vector<2x64xf32> to vector<2x32xf32>
    %258 = vector.extract_strided_slice %127 {offsets = [0, 32], sizes = [2, 32], strides = [1, 1]} : vector<2x64xf32> to vector<2x32xf32>
    %259 = tpu.concatenate %257, %258 in 1 : vector<2x32xf32>, vector<2x32xf32> -> vector<2x64xf32>
    %260 = vector.shape_cast %259 : vector<2x64xf32> to vector<2x1x64xf32>
    %261 = vector.extract_strided_slice %185 {offsets = [0, 0], sizes = [2, 32], strides = [1, 1]} : vector<2x64xf32> to vector<2x32xf32>
    %262 = vector.extract_strided_slice %98 {offsets = [0, 32], sizes = [2, 32], strides = [1, 1]} : vector<2x64xf32> to vector<2x32xf32>
    %263 = tpu.concatenate %261, %262 in 1 : vector<2x32xf32>, vector<2x32xf32> -> vector<2x64xf32>
    %264 = vector.shape_cast %263 : vector<2x64xf32> to vector<2x1x64xf32>
    %265 = vector.extract_strided_slice %214 {offsets = [0, 0], sizes = [2, 32], strides = [1, 1]} : vector<2x64xf32> to vector<2x32xf32>
    %266 = vector.extract_strided_slice %69 {offsets = [0, 32], sizes = [2, 32], strides = [1, 1]} : vector<2x64xf32> to vector<2x32xf32>
    %267 = tpu.concatenate %265, %266 in 1 : vector<2x32xf32>, vector<2x32xf32> -> vector<2x64xf32>
    %268 = vector.shape_cast %267 : vector<2x64xf32> to vector<2x1x64xf32>
    %269 = vector.extract_strided_slice %240 {offsets = [0, 0], sizes = [2, 32], strides = [1, 1]} : vector<2x64xf32> to vector<2x32xf32>
    %270 = vector.extract_strided_slice %40 {offsets = [0, 32], sizes = [2, 32], strides = [1, 1]} : vector<2x64xf32> to vector<2x32xf32>
    %271 = tpu.concatenate %269, %270 in 1 : vector<2x32xf32>, vector<2x32xf32> -> vector<2x64xf32>
    %272 = vector.shape_cast %271 : vector<2x64xf32> to vector<2x1x64xf32>
    %273 = tpu.concatenate %244, %248, %252, %256, %260, %264, %268, %272 in 1 : vector<2x1x64xf32>, vector<2x1x64xf32>, vector<2x1x64xf32>, vector<2x1x64xf32>, vector<2x1x64xf32>, vector<2x1x64xf32>, vector<2x1x64xf32>, vector<2x1x64xf32> -> vector<2x8x64xf32>
    %c0_42 = arith.constant 0 : index
    %c0_43 = arith.constant 0 : index
    %274 = vector.load %arg3[%c0_42, %c0_43] : memref<65x5xf32, #tpu.memory_space<vmem>>, vector<64x5xf32>
    %c64 = arith.constant 64 : index
    %c4 = arith.constant 4 : index
    %275 = vector.load %arg3[%c64, %c4] : memref<65x5xf32, #tpu.memory_space<vmem>>, vector<1x1xf32>
    %276 = vector.shape_cast %273 : vector<2x8x64xf32> to vector<16x64xf32>
    %cst_44 = arith.constant dense<0.000000e+00> : vector<16x5xf32>
    %277 = tpu.matmul %276, %274, %cst_44 {dimension_numbers = #tpu.dot_dimension_numbers<[1], [0], [0], [1], [0, 0, 1, 1], [], []>} : vector<16x64xf32>, vector<64x5xf32>, vector<16x5xf32> -> vector<16x5xf32>
    %278 = vector.shape_cast %277 : vector<16x5xf32> to vector<2x8x5xf32>
    %279 = vector.extract_strided_slice %278 {offsets = [0, 0, 0], sizes = [2, 8, 4], strides = [1, 1, 1]} : vector<2x8x5xf32> to vector<2x8x4xf32>
    %280 = vector.extract_strided_slice %278 {offsets = [0, 0, 4], sizes = [2, 8, 1], strides = [1, 1, 1]} : vector<2x8x5xf32> to vector<2x8x1xf32>
    %281 = vector.extract_strided_slice %1 {offsets = [0, 0, 0], sizes = [2, 8, 1], strides = [1, 1, 1]} : vector<2x8x64xf32> to vector<2x8x1xf32>
    %cst_45 = arith.constant 1.000000e+00 : f32
    %282 = vector.broadcast %cst_45 : f32 to vector<2x8x1xf32>
    %283 = arith.subf %281, %282 : vector<2x8x1xf32>
    %cst_46 = arith.constant 1.000000e+30 : f32
    %284 = vector.broadcast %cst_46 : f32 to vector<2x8x1xf32>
    %285 = arith.mulf %283, %284 : vector<2x8x1xf32>
    %286 = vector.broadcast %285 : vector<2x8x1xf32> to vector<2x8x4xf32>
    %287 = arith.addf %279, %286 : vector<2x8x4xf32>
    %cst_47 = arith.constant dense<0xFF800000> : vector<2x4xf32>
    %288 = vector.multi_reduction <maximumf>, %287, %cst_47 [1] : vector<2x8x4xf32> to vector<2x4xf32>
    %289 = vector.shape_cast %288 : vector<2x4xf32> to vector<2x1x4xf32>
    %290 = vector.broadcast %289 : vector<2x1x4xf32> to vector<2x8x4xf32>
    %291 = arith.subf %287, %290 : vector<2x8x4xf32>
    %292 = math.exp %291 : vector<2x8x4xf32>
    %cst_48 = arith.constant dense<0.000000e+00> : vector<2x4xf32>
    %293 = vector.multi_reduction <add>, %292, %cst_48 [1] : vector<2x8x4xf32> to vector<2x4xf32>
    %294 = vector.shape_cast %293 : vector<2x4xf32> to vector<2x1x4xf32>
    %295 = tpu.reciprocal %294 {approx = true} : vector<2x1x4xf32> -> vector<2x1x4xf32>
    %296 = vector.broadcast %295 : vector<2x1x4xf32> to vector<2x8x4xf32>
    %297 = arith.mulf %292, %296 : vector<2x8x4xf32>
    %298 = vector.broadcast %280 : vector<2x8x1xf32> to vector<2x8x4xf32>
    %299 = arith.mulf %297, %298 : vector<2x8x4xf32>
    %cst_49 = arith.constant dense<0.000000e+00> : vector<2x4xf32>
    %300 = vector.multi_reduction <add>, %299, %cst_49 [1] : vector<2x8x4xf32> to vector<2x4xf32>
    %301 = vector.broadcast %275 : vector<1x1xf32> to vector<2x4xf32>
    %302 = arith.addf %300, %301 : vector<2x4xf32>
    %cst_50 = arith.constant dense<0xFF800000> : vector<2xf32>
    %303 = vector.multi_reduction <maximumf>, %302, %cst_50 [1] : vector<2x4xf32> to vector<2xf32>
    %304 = vector.shape_cast %303 : vector<2xf32> to vector<2x1xf32>
    %305 = vector.broadcast %304 : vector<2x1xf32> to vector<2x4xf32>
    %306 = arith.subf %302, %305 : vector<2x4xf32>
    %307 = math.exp %306 : vector<2x4xf32>
    %cst_51 = arith.constant dense<0.000000e+00> : vector<2xf32>
    %308 = vector.multi_reduction <add>, %307, %cst_51 [1] : vector<2x4xf32> to vector<2xf32>
    %309 = vector.shape_cast %308 : vector<2xf32> to vector<2x1xf32>
    %310 = math.log %309 : vector<2x1xf32>
    %311 = vector.broadcast %310 : vector<2x1xf32> to vector<2x4xf32>
    %312 = arith.subf %306, %311 : vector<2x4xf32>
    %c0_52 = arith.constant 0 : index
    %c0_53 = arith.constant 0 : index
    %313 = vector.load %arg4[%c0_52, %c0_53] : memref<2x4xf32, #tpu.memory_space<vmem>>, vector<2x4xf32>
    tpu.vector_store %arg4[%c0_52, %c0_53], %312 {strides = array<i32>} : memref<2x4xf32, #tpu.memory_space<vmem>>, vector<2x4xf32>,
    return
  }
}

</mosaic_0001>

<llo_original>
// kernel: net_lstm_forward.1
$region0: #{net_lstm_forward.1}
  #allocation0 [shape = 'u32[]', space=smem, size = 0x4, offset = 0x4, fixed_abs, tag = 'smem constant byte address 0x4 - core index']
  #allocation1 [shape = 'u32[72,128]{1,0:T(1,128)}', space=vmem, size = 0x9000, scoped, tag = 'internal scratch']
  %s0 = inlined_call_operand.vmem [shape: f32[2,8,32], index: 0, kind: input, shape index: {}]
  %s1 = inlined_call_operand.vmem [shape: f32[2,8,64], index: 1, kind: input, shape index: {}]
  %s2 = inlined_call_operand.vmem [shape: f32[97,256], index: 2, kind: input, shape index: {}]
  %s3 = inlined_call_operand.vmem [shape: f32[65,5], index: 3, kind: input, shape index: {}]
  %s4 = inlined_call_operand.hbm [shape: f32[2,4], index: 4, kind: output, shape index: {}]
  %s5 = sld [smem:[#allocation0]]
  $region26: #{net_lstm_forward.1} parent=0
    _
  %s7 = ssub.s32 1, %s5
  %s8 = scalar_select 0, %s7, %s5
  $region1: #{net_lstm_forward.1} parent=0
    #allocation2 [shape = 'u8[1024]{0}', space=vmem, size = 0x400, scoped, tag = 'output window, operand 0, single buffered']
    #allocation3 [shape = 's32[1]{0}', space=sflag, size = 0x4, scoped, tag = 'scoped memory for net_lstm_forward.1']
    %9 = vsyncpa [#allocation3], 0
    // Predicated region
    $region2: #{net_lstm_forward.1} parent=1 // pred_check
      _
    $region3: #{net_lstm_forward.1} parent=1 // pred_check_branch
      %11 = sbr.rel (0) target = $region5
    $region4: #{net_lstm_forward.1} parent=1 // pred_region
      _
    $region5: #{net_lstm_forward.1} parent=1 // pred_fallthru
      _
    // Predicated region
    $region6: #{net_lstm_forward.1} parent=1 // pred_check
      _
    $region7: #{net_lstm_forward.1} parent=1 // pred_check_branch
      %13 = sbr.rel (0) target = $region9
    $region8: #{net_lstm_forward.1} parent=1 // pred_region
      _
    $region9: #{net_lstm_forward.1} parent=1 // pred_fallthru
      _
    // Predicated region
    $region10: #{net_lstm_forward.1} parent=1 // pred_check
      _
    $region11: #{net_lstm_forward.1} parent=1 // pred_check_branch
      %15 = sbr.rel (0) target = $region13
    $region12: #{net_lstm_forward.1} parent=1 // pred_region
      _
    $region13: #{net_lstm_forward.1} parent=1 // pred_fallthru
      _
    // Predicated region
    $region14: #{net_lstm_forward.1} parent=1 // pred_check
      _
    $region15: #{net_lstm_forward.1} parent=1 // pred_check_branch
      %17 = sbr.rel (0) target = $region17
    $region16: #{net_lstm_forward.1} parent=1 // pred_region
      _
    $region17: #{net_lstm_forward.1} parent=1 // pred_fallthru
      _
    %v18 = vld [vmem:[%s0] sm:$0xff]
    %v19 = vld [vmem:[%s0 + $0x8] sm:$0xff]
    %v20 = vld [vmem:[%s1] sm:$0xff]
    %v21 = vld [vmem:[%s1 + $0x8] sm:$0xff]
    %v22 = vld [vmem:[%s2] sm:$0xff]
    %v23 = vld [vmem:[%s2 + $0x8] sm:$0xff]
    %v24 = vld [vmem:[%s2 + $0x10] sm:$0xff]
    %v25 = vld [vmem:[%s2 + $0x18] sm:$0xff]
    %v26 = vld [vmem:[%s2 + $0x20] sm:$0xff]
    %v27 = vld [vmem:[%s2 + $0x28] sm:$0xff]
    %v28 = vld [vmem:[%s2 + $0x30] sm:$0xff]
    %v29 = vld [vmem:[%s2 + $0x38] sm:$0xff]
    %v30 = vld [vmem:[%s2 + $0x40] sm:$0xff]
    %v31 = vld [vmem:[%s2 + $0x48] sm:$0xff]
    %v32 = vld [vmem:[%s2 + $0x50] sm:$0xff]
    %v33 = vld [vmem:[%s2 + $0x58] sm:$0xff]
    %v34 = vld [vmem:[%s2 + $0x60] sm:$0xff]
    %v35 = vld [vmem:[%s2 + $0x68] sm:$0xff]
    %v36 = vld [vmem:[%s2 + $0x70] sm:$0xff]
    %v37 = vld [vmem:[%s2 + $0x78] sm:$0xff]
    %v38 = vld [vmem:[%s2 + $0x80] sm:$0xff]
    %v39 = vld [vmem:[%s2 + $0x88] sm:$0xff]
    %v40 = vld [vmem:[%s2 + $0x90] sm:$0xff]
    %v41 = vld [vmem:[%s2 + $0x98] sm:$0xff]
    %v42 = vld [vmem:[%s2 + $0xa0] sm:$0xff]
    %v43 = vld [vmem:[%s2 + $0xa8] sm:$0xff]
    %v44 = vld [vmem:[%s2 + $0xb0] sm:$0xff]
    %v45 = vld [vmem:[%s2 + $0xb8] sm:$0xff]
    %s46 = scalar_lea.vmem %s2, 192
    %v47 = vld [vmem:[%s46] ss:$8 sm:$0x3]
    %v49 = vperm.slane %v47, 0
    %v50 = vperm.slane %v47, 1
    %vm53 = vcmask 261120
    %v55 = vsel %vm53, %v18, 0
    %v58 = vsel %vm53, %v19, 0
    %60 = vmatpush.msra.mxu0 0.0
    %61 = vmatpush.msra.mxu0 0.0
    %62 = vmatpush.msra.mxu0 0.0
    %63 = vmatpush.msra.mxu0 0.0
    %64 = vmatpush.msra.mxu0 0.0
    %65 = vmatpush.msra.mxu0 0.0
    %66 = vmatpush.msra.mxu0 0.0
    %67 = vmatpush.msra.mxu0 0.0
    %68 = vmatpush.msra.mxu0 0.0
    %69 = vmatpush.msra.mxu0 0.0
    %70 = vmatpush.msra.mxu0 0.0
    %71 = vmatpush.msra.mxu0 0.0
    %72 = vmatpush.msra.mxu0 %v28
    %73 = vmatpush.msra.mxu0 %v26
    %74 = vmatpush.msra.mxu0 %v24
    %75 = vmatpush.msra.mxu0 %v22
    %76 = vmatmul.f32.gmra.mxu0 %v55
    %v77 = vpop.f32.mrf.mxu0
    %v78 = vadd.f32 %v49, %v77
    %79 = vmatmul.f32.gmra.mxu0 %v58
    %v80 = vpop.f32.mrf.mxu0
    %v81 = vadd.f32 %v49, %v80
    %82 = vdwg.mxu0
    %83 = vmatpush.msra.mxu0 0.0
    %84 = vmatpush.msra.mxu0 0.0
    %85 = vmatpush.msra.mxu0 0.0
    %86 = vmatpush.msra.mxu0 0.0
    %87 = vmatpush.msra.mxu0 0.0
    %88 = vmatpush.msra.mxu0 0.0
    %89 = vmatpush.msra.mxu0 0.0
    %90 = vmatpush.msra.mxu0 0.0
    %91 = vmatpush.msra.mxu0 0.0
    %92 = vmatpush.msra.mxu0 0.0
    %93 = vmatpush.msra.mxu0 0.0
    %94 = vmatpush.msra.mxu0 0.0
    %95 = vmatpush.msra.mxu0 %v29
    %96 = vmatpush.msra.mxu0 %v27
    %97 = vmatpush.msra.mxu0 %v25
    %98 = vmatpush.msra.mxu0 %v23
    %99 = vmatmul.f32.gmra.mxu0 %v55
    %v100 = vpop.f32.mrf.mxu0
    %v101 = vadd.f32 %v50, %v100
    %102 = vmatmul.f32.gmra.mxu0 %v58
    %v103 = vpop.f32.mrf.mxu0
    %v104 = vadd.f32 %v50, %v103
    %105 = vdwg.mxu0
    %vm106 = vcmask 523264
    %v108 = vsel %vm106, 0.0, 0
    %110 = vmatpush.msra.mxu0 0.0
    %111 = vmatpush.msra.mxu0 0.0
    %112 = vmatpush.msra.mxu0 0.0
    %113 = vmatpush.msra.mxu0 0.0
    %114 = vmatpush.msra.mxu0 0.0
    %115 = vmatpush.msra.mxu0 0.0
    %116 = vmatpush.msra.mxu0 0.0
    %117 = vmatpush.msra.mxu0 0.0
    %118 = vmatpush.msra.mxu0 %v44
    %119 = vmatpush.msra.mxu0 %v42
    %120 = vmatpush.msra.mxu0 %v40
    %121 = vmatpush.msra.mxu0 %v38
    %122 = vmatpush.msra.mxu0 %v36
    %123 = vmatpush.msra.mxu0 %v34
    %124 = vmatpush.msra.mxu0 %v32
    %125 = vmatpush.msra.mxu0 %v30
    %126 = vmatmul.f32.gmra.mxu0 %v108
    %v127 = vpop.f32.mrf.mxu0
    %v128 = vadd.f32 0.0, %v127
    %129 = vdwg.mxu0
    %130 = vmatpush.msra.mxu0 0.0
    %131 = vmatpush.msra.mxu0 0.0
    %132 = vmatpush.msra.mxu0 0.0
    %133 = vmatpush.msra.mxu0 0.0
    %134 = vmatpush.msra.mxu0 0.0
    %135 = vmatpush.msra.mxu0 0.0
    %136 = vmatpush.msra.mxu0 0.0
    %137 = vmatpush.msra.mxu0 0.0
    %138 = vmatpush.msra.mxu0 %v45
    %139 = vmatpush.msra.mxu0 %v43
    %140 = vmatpush.msra.mxu0 %v41
    %141 = vmatpush.msra.mxu0 %v39
    %142 = vmatpush.msra.mxu0 %v37
    %143 = vmatpush.msra.mxu0 %v35
    %144 = vmatpush.msra.mxu0 %v33
    %145 = vmatpush.msra.mxu0 %v31
    %146 = vmatmul.f32.gmra.mxu0 %v108
    %v147 = vpop.f32.mrf.mxu0
    %v148 = vadd.f32 0.0, %v147
    %149 = vdwg.mxu0
    %v152 = vrot.slane %v128, 1
    %v153 = vrot.slane %v148, 1
    %v158 = vadd.f32 %v78, %v128
    %v159 = vadd.f32 %v101, %v148
    %v160 = vadd.f32 %v81, %v152
    %v161 = vadd.f32 %v104, %v153
    %v162 = vxor.u32 %v158, 2147483648
    %v163 = vxor.u32 %v159, 2147483648
    %v164 = vxor.u32 %v160, 2147483648
    %v165 = vxor.u32 %v161, 2147483648
    %v166 = vmul.f32 %v162, 1.442695
    %v167 = vpow.pop %v166
    %v168 = vmul.f32 %v163, 1.442695
    %v169 = vpow.pop %v168
    %v170 = vmul.f32 %v164, 1.442695
    %v171 = vpow.pop %v170
    %v172 = vmul.f32 %v165, 1.442695
    %v173 = vpow.pop %v172
    %v174 = vadd.f32 %v167, 1.0
    %v175 = vadd.f32 %v169, 1.0
    %v176 = vadd.f32 %v171, 1.0
    %v177 = vadd.f32 %v173, 1.0
    %v178 = vrcp.pop %v174
    %v179 = vmul.f32 %v174, %v178
    %v180 = vsub.f32 1.0, %v179
    %v181 = vmul.f32 %v178, %v180
    %v182 = vadd.f32 %v178, %v181
    %vm183 = vweird.f32 %v174
    %vm184 = vweird.f32 %v178
    %vm185 = vmor %vm183, %vm184
    %v186 = vsel %vm185, %v178, %v182
    %v187 = vand.u32 2147483647, %v174
    %vm188 = vcmp.eq.f32.partialorder %v187, 8.507059e+37
    %v189 = vand.u32 %v174, 2147483648
    %v190 = vor.u32 1.1754944e-38, %v189
    %v191 = vsel %vm188, %v190, %v186
    %v192 = vmul.f32 1.0, %v191
    %v193 = vrcp.pop %v175
    %v194 = vmul.f32 %v175, %v193
    %v195 = vsub.f32 1.0, %v194
    %v196 = vmul.f32 %v193, %v195
    %v197 = vadd.f32 %v193, %v196
    %vm198 = vweird.f32 %v175
    %vm199 = vweird.f32 %v193
    %vm200 = vmor %vm198, %vm199
    %v201 = vsel %vm200, %v193, %v197
    %v202 = vand.u32 2147483647, %v175
    %vm203 = vcmp.eq.f32.partialorder %v202, 8.507059e+37
    %v204 = vand.u32 %v175, 2147483648
    %v205 = vor.u32 1.1754944e-38, %v204
    %v206 = vsel %vm203, %v205, %v201
    %v207 = vmul.f32 1.0, %v206
    %v208 = vrcp.pop %v176
    %v209 = vmul.f32 %v176, %v208
    %v210 = vsub.f32 1.0, %v209
    %v211 = vmul.f32 %v208, %v210
    %v212 = vadd.f32 %v208, %v211
    %vm213 = vweird.f32 %v176
    %vm214 = vweird.f32 %v208
    %vm215 = vmor %vm213, %vm214
    %v216 = vsel %vm215, %v208, %v212
    %v217 = vand.u32 2147483647, %v176
    %vm218 = vcmp.eq.f32.partialorder %v217, 8.507059e+37
    %v219 = vand.u32 %v176, 2147483648
    %v220 = vor.u32 1.1754944e-38, %v219
    %v221 = vsel %vm218, %v220, %v216
    %v222 = vmul.f32 1.0, %v221
    %v223 = vrcp.pop %v177
    %v224 = vmul.f32 %v177, %v223
    %v225 = vsub.f32 1.0, %v224
    %v226 = vmul.f32 %v223, %v225
    %v227 = vadd.f32 %v223, %v226
    %vm228 = vweird.f32 %v177
    %vm229 = vweird.f32 %v223
    %vm230 = vmor %vm228, %vm229
    %v231 = vsel %vm230, %v223, %v227
    %v232 = vand.u32 2147483647, %v177
    %vm233 = vcmp.eq.f32.partialorder %v232, 8.507059e+37
    %v234 = vand.u32 %v177, 2147483648
    %v235 = vor.u32 1.1754944e-38, %v234
    %v236 = vsel %vm233, %v235, %v231
    %v237 = vmul.f32 1.0, %v236
    %v238 = vtanh.pop %v159
    %v239 = vtanh.pop %v161
    %v240 = vmul.f32 %v192, 0.0
    %v241 = vmul.f32 %v222, 0.0
    %244 = vrot.lane.b32.xlu0 %v238, 64
    %v245 = vpop.permute.xlu0 %244
    %246 = vrot.lane.b32.xlu0 %v239, 64
    %v247 = vpop.permute.xlu0 %246
    %v250 = vmul.f32 %v192, %v245
    %v251 = vmul.f32 %v222, %v247
    %254 = vrot.lane.b32.xlu0 %v250, 64
    %v255 = vpop.permute.xlu0 %254
    %256 = vrot.lane.b32.xlu0 %v251, 64
    %v257 = vpop.permute.xlu0 %256
    %v260 = vadd.f32 %v240, %v255
    %v261 = vadd.f32 %v241, %v257
    %v262 = vtanh.pop %v260
    %v263 = vtanh.pop %v261
    %266 = vrot.lane.b32.xlu0 %v262, 64
    %v267 = vpop.permute.xlu0 %266
    %268 = vrot.lane.b32.xlu0 %v263, 64
    %v269 = vpop.permute.xlu0 %268
    %v272 = vmul.f32 %v207, %v267
    %v273 = vmul.f32 %v237, %v269
    %vm274 = vcmp.gt.f32.partialorder %v20, 0.0
    %vm275 = vcmp.gt.f32.partialorder %v21, 0.0
    %278 = vrot.lane.b32.xlu0 %v260, 64
    %v279 = vpop.permute.xlu0 %278
    %280 = vrot.lane.b32.xlu0 %v261, 64
    %v281 = vpop.permute.xlu0 %280
    %v284 = vsel %vm274, %v279, 0.0
    %v285 = vsel %vm275, %v281, 0.0
    %v286 = vsel %vm274, %v272, 0.0
    %v287 = vsel %vm275, %v273, 0.0
    %v288 = vmul.f32 %v286, %v20
    %v289 = vmul.f32 %v287, %v21
    %v292 = vrot.slane %v287, 7
    %vm293 = vcmask 1041409
    %v294 = vsel %vm293, %v292, %v286
    %v295 = vsel %vm106, %v294, 0
    %297 = vmatpush.msra.mxu0 0.0
    %298 = vmatpush.msra.mxu0 0.0
    %299 = vmatpush.msra.mxu0 0.0
    %300 = vmatpush.msra.mxu0 0.0
    %301 = vmatpush.msra.mxu0 0.0
    %302 = vmatpush.msra.mxu0 0.0
    %303 = vmatpush.msra.mxu0 0.0
    %304 = vmatpush.msra.mxu0 0.0
    %305 = vmatpush.msra.mxu0 %v44
    %306 = vmatpush.msra.mxu0 %v42
    %307 = vmatpush.msra.mxu0 %v40
    %308 = vmatpush.msra.mxu0 %v38
    %309 = vmatpush.msra.mxu0 %v36
    %310 = vmatpush.msra.mxu0 %v34
    %311 = vmatpush.msra.mxu0 %v32
    %312 = vmatpush.msra.mxu0 %v30
    %313 = vmatmul.f32.gmra.mxu0 %v295
    %v314 = vpop.f32.mrf.mxu0
    %v315 = vadd.f32 0.0, %v314
    %316 = vdwg.mxu0
    %317 = vmatpush.msra.mxu0 0.0
    %318 = vmatpush.msra.mxu0 0.0
    %319 = vmatpush.msra.mxu0 0.0
    %320 = vmatpush.msra.mxu0 0.0
    %321 = vmatpush.msra.mxu0 0.0
    %322 = vmatpush.msra.mxu0 0.0
    %323 = vmatpush.msra.mxu0 0.0
    %324 = vmatpush.msra.mxu0 0.0
    %325 = vmatpush.msra.mxu0 %v45
    %326 = vmatpush.msra.mxu0 %v43
    %327 = vmatpush.msra.mxu0 %v41
    %328 = vmatpush.msra.mxu0 %v39
    %329 = vmatpush.msra.mxu0 %v37
    %330 = vmatpush.msra.mxu0 %v35
    %331 = vmatpush.msra.mxu0 %v33
    %332 = vmatpush.msra.mxu0 %v31
    %333 = vmatmul.f32.gmra.mxu0 %v295
    %v334 = vpop.f32.mrf.mxu0
    %v335 = vadd.f32 0.0, %v334
    %336 = vdwg.mxu0
    %v339 = vrot.slane %v315, 7
    %v340 = vrot.slane %v335, 7
    %v345 = vadd.f32 %v78, %v339
    %v346 = vadd.f32 %v101, %v340
    %v347 = vadd.f32 %v81, %v315
    %v348 = vadd.f32 %v104, %v335
    %v349 = vxor.u32 %v345, 2147483648
    %v350 = vxor.u32 %v346, 2147483648
    %v351 = vxor.u32 %v347, 2147483648
    %v352 = vxor.u32 %v348, 2147483648
    %v353 = vmul.f32 %v349, 1.442695
    %v354 = vpow.pop %v353
    %v355 = vmul.f32 %v350, 1.442695
    %v356 = vpow.pop %v355
    %v357 = vmul.f32 %v351, 1.442695
    %v358 = vpow.pop %v357
    %v359 = vmul.f32 %v352, 1.442695
    %v360 = vpow.pop %v359
    %v361 = vadd.f32 %v354, 1.0
    %v362 = vadd.f32 %v356, 1.0
    %v363 = vadd.f32 %v358, 1.0
    %v364 = vadd.f32 %v360, 1.0
    %v365 = vrcp.pop %v361
    %v366 = vmul.f32 %v361, %v365
    %v367 = vsub.f32 1.0, %v366
    %v368 = vmul.f32 %v365, %v367
    %v369 = vadd.f32 %v365, %v368
    %vm370 = vweird.f32 %v361
    %vm371 = vweird.f32 %v365
    %vm372 = vmor %vm370, %vm371
    %v373 = vsel %vm372, %v365, %v369
    %v374 = vand.u32 2147483647, %v361
    %vm375 = vcmp.eq.f32.partialorder %v374, 8.507059e+37
    %v376 = vand.u32 %v361, 2147483648
    %v377 = vor.u32 1.1754944e-38, %v376
    %v378 = vsel %vm375, %v377, %v373
    %v379 = vmul.f32 1.0, %v378
    %v380 = vrcp.pop %v362
    %v381 = vmul.f32 %v362, %v380
    %v382 = vsub.f32 1.0, %v381
    %v383 = vmul.f32 %v380, %v382
    %v384 = vadd.f32 %v380, %v383
    %vm385 = vweird.f32 %v362
    %vm386 = vweird.f32 %v380
    %vm387 = vmor %vm385, %vm386
    %v388 = vsel %vm387, %v380, %v384
    %v389 = vand.u32 2147483647, %v362
    %vm390 = vcmp.eq.f32.partialorder %v389, 8.507059e+37
    %v391 = vand.u32 %v362, 2147483648
    %v392 = vor.u32 1.1754944e-38, %v391
    %v393 = vsel %vm390, %v392, %v388
    %v394 = vmul.f32 1.0, %v393
    %v395 = vrcp.pop %v363
    %v396 = vmul.f32 %v363, %v395
    %v397 = vsub.f32 1.0, %v396
    %v398 = vmul.f32 %v395, %v397
    %v399 = vadd.f32 %v395, %v398
    %vm400 = vweird.f32 %v363
    %vm401 = vweird.f32 %v395
    %vm402 = vmor %vm400, %vm401
    %v403 = vsel %vm402, %v395, %v399
    %v404 = vand.u32 2147483647, %v363
    %vm405 = vcmp.eq.f32.partialorder %v404, 8.507059e+37
    %v406 = vand.u32 %v363, 2147483648
    %v407 = vor.u32 1.1754944e-38, %v406
    %v408 = vsel %vm405, %v407, %v403
    %v409 = vmul.f32 1.0, %v408
    %v410 = vrcp.pop %v364
    %v411 = vmul.f32 %v364, %v410
    %v412 = vsub.f32 1.0, %v411
    %v413 = vmul.f32 %v410, %v412
    %v414 = vadd.f32 %v410, %v413
    %vm415 = vweird.f32 %v364
    %vm416 = vweird.f32 %v410
    %vm417 = vmor %vm415, %vm416
    %v418 = vsel %vm417, %v410, %v414
    %v419 = vand.u32 2147483647, %v364
    %vm420 = vcmp.eq.f32.partialorder %v419, 8.507059e+37
    %v421 = vand.u32 %v364, 2147483648
    %v422 = vor.u32 1.1754944e-38, %v421
    %v423 = vsel %vm420, %v422, %v418
    %v424 = vmul.f32 1.0, %v423
    %v425 = vtanh.pop %v346
    %v426 = vtanh.pop %v348
    %v429 = vrot.slane %v284, 7
    %v430 = vrot.slane %v285, 7
    %431 = vrot.lane.b32.xlu0 %v429, 64
    %v432 = vpop.permute.xlu0 %431
    %433 = vrot.lane.b32.xlu0 %v430, 64
    %v434 = vpop.permute.xlu0 %433
    %v437 = vmul.f32 %v379, %v432
    %v438 = vmul.f32 %v409, %v434
    %441 = vrot.lane.b32.xlu0 %v425, 64
    %v442 = vpop.permute.xlu0 %441
    %443 = vrot.lane.b32.xlu0 %v426, 64
    %v444 = vpop.permute.xlu0 %443
    %v447 = vmul.f32 %v379, %v442
    %v448 = vmul.f32 %v409, %v444
    %451 = vrot.lane.b32.xlu0 %v447, 64
    %v452 = vpop.permute.xlu0 %451
    %453 = vrot.lane.b32.xlu0 %v448, 64
    %v454 = vpop.permute.xlu0 %453
    %v457 = vadd.f32 %v437, %v452
    %v458 = vadd.f32 %v438, %v454
    %v459 = vtanh.pop %v457
    %v460 = vtanh.pop %v458
    %463 = vrot.lane.b32.xlu0 %v459, 64
    %v464 = vpop.permute.xlu0 %463
    %465 = vrot.lane.b32.xlu0 %v460, 64
    %v466 = vpop.permute.xlu0 %465
    %v469 = vmul.f32 %v394, %v464
    %v470 = vmul.f32 %v424, %v466
    %473 = vrot.lane.b32.xlu0 %v457, 64
    %v474 = vpop.permute.xlu0 %473
    %475 = vrot.lane.b32.xlu0 %v458, 64
    %v476 = vpop.permute.xlu0 %475
    %v481 = vsel %vm274, %v474, %v429
    %v482 = vsel %vm275, %v476, %v430
    %v483 = vrot.slane %v286, 7
    %v486 = vsel %vm274, %v469, %v483
    %v487 = vsel %vm275, %v470, %v292
    %v488 = vmul.f32 %v486, %v20
    %v489 = vmul.f32 %v487, %v21
    %v492 = vrot.slane %v486, 1
    %v493 = vsel %vm293, %v487, %v492
    %v494 = vsel %vm106, %v493, 0
    %496 = vmatpush.msra.mxu0 0.0
    %497 = vmatpush.msra.mxu0 0.0
    %498 = vmatpush.msra.mxu0 0.0
    %499 = vmatpush.msra.mxu0 0.0
    %500 = vmatpush.msra.mxu0 0.0
    %501 = vmatpush.msra.mxu0 0.0
    %502 = vmatpush.msra.mxu0 0.0
    %503 = vmatpush.msra.mxu0 0.0
    %504 = vmatpush.msra.mxu0 %v44
    %505 = vmatpush.msra.mxu0 %v42
    %506 = vmatpush.msra.mxu0 %v40
    %507 = vmatpush.msra.mxu0 %v38
    %508 = vmatpush.msra.mxu0 %v36
    %509 = vmatpush.msra.mxu0 %v34
    %510 = vmatpush.msra.mxu0 %v32
    %511 = vmatpush.msra.mxu0 %v30
    %512 = vmatmul.f32.gmra.mxu0 %v494
    %v513 = vpop.f32.mrf.mxu0
    %v514 = vadd.f32 0.0, %v513
    %515 = vdwg.mxu0
    %516 = vmatpush.msra.mxu0 0.0
    %517 = vmatpush.msra.mxu0 0.0
    %518 = vmatpush.msra.mxu0 0.0
    %519 = vmatpush.msra.mxu0 0.0
    %520 = vmatpush.msra.mxu0 0.0
    %521 = vmatpush.msra.mxu0 0.0
    %522 = vmatpush.msra.mxu0 0.0
    %523 = vmatpush.msra.mxu0 0.0
    %524 = vmatpush.msra.mxu0 %v45
    %525 = vmatpush.msra.mxu0 %v43
    %526 = vmatpush.msra.mxu0 %v41
    %527 = vmatpush.msra.mxu0 %v39
    %528 = vmatpush.msra.mxu0 %v37
    %529 = vmatpush.msra.mxu0 %v35
    %530 = vmatpush.msra.mxu0 %v33
    %531 = vmatpush.msra.mxu0 %v31
    %532 = vmatmul.f32.gmra.mxu0 %v494
    %v533 = vpop.f32.mrf.mxu0
    %v534 = vadd.f32 0.0, %v533
    %535 = vdwg.mxu0
    %v538 = vrot.slane %v514, 6
    %v539 = vrot.slane %v534, 6
    %v540 = vrot.slane %v514, 7
    %v541 = vrot.slane %v534, 7
    %v546 = vadd.f32 %v78, %v538
    %v547 = vadd.f32 %v101, %v539
    %v548 = vadd.f32 %v81, %v540
    %v549 = vadd.f32 %v104, %v541
    %v550 = vxor.u32 %v546, 2147483648
    %v551 = vxor.u32 %v547, 2147483648
    %v552 = vxor.u32 %v548, 2147483648
    %v553 = vxor.u32 %v549, 2147483648
    %v554 = vmul.f32 %v550, 1.442695
    %v555 = vpow.pop %v554
    %v556 = vmul.f32 %v551, 1.442695
    %v557 = vpow.pop %v556
    %v558 = vmul.f32 %v552, 1.442695
    %v559 = vpow.pop %v558
    %v560 = vmul.f32 %v553, 1.442695
    %v561 = vpow.pop %v560
    %v562 = vadd.f32 %v555, 1.0
    %v563 = vadd.f32 %v557, 1.0
    %v564 = vadd.f32 %v559, 1.0
    %v565 = vadd.f32 %v561, 1.0
    %v566 = vrcp.pop %v562
    %v567 = vmul.f32 %v562, %v566
    %v568 = vsub.f32 1.0, %v567
    %v569 = vmul.f32 %v566, %v568
    %v570 = vadd.f32 %v566, %v569
    %vm571 = vweird.f32 %v562
    %vm572 = vweird.f32 %v566
    %vm573 = vmor %vm571, %vm572
    %v574 = vsel %vm573, %v566, %v570
    %v575 = vand.u32 2147483647, %v562
    %vm576 = vcmp.eq.f32.partialorder %v575, 8.507059e+37
    %v577 = vand.u32 %v562, 2147483648
    %v578 = vor.u32 1.1754944e-38, %v577
    %v579 = vsel %vm576, %v578, %v574
    %v580 = vmul.f32 1.0, %v579
    %v581 = vrcp.pop %v563
    %v582 = vmul.f32 %v563, %v581
    %v583 = vsub.f32 1.0, %v582
    %v584 = vmul.f32 %v581, %v583
    %v585 = vadd.f32 %v581, %v584
    %vm586 = vweird.f32 %v563
    %vm587 = vweird.f32 %v581
    %vm588 = vmor %vm586, %vm587
    %v589 = vsel %vm588, %v581, %v585
    %v590 = vand.u32 2147483647, %v563
    %vm591 = vcmp.eq.f32.partialorder %v590, 8.507059e+37
    %v592 = vand.u32 %v563, 2147483648
    %v593 = vor.u32 1.1754944e-38, %v592
    %v594 = vsel %vm591, %v593, %v589
    %v595 = vmul.f32 1.0, %v594
    %v596 = vrcp.pop %v564
    %v597 = vmul.f32 %v564, %v596
    %v598 = vsub.f32 1.0, %v597
    %v599 = vmul.f32 %v596, %v598
    %v600 = vadd.f32 %v596, %v599
    %vm601 = vweird.f32 %v564
    %vm602 = vweird.f32 %v596
    %vm603 = vmor %vm601, %vm602
    %v604 = vsel %vm603, %v596, %v600
    %v605 = vand.u32 2147483647, %v564
    %vm606 = vcmp.eq.f32.partialorder %v605, 8.507059e+37
    %v607 = vand.u32 %v564, 2147483648
    %v608 = vor.u32 1.1754944e-38, %v607
    %v609 = vsel %vm606, %v608, %v604
    %v610 = vmul.f32 1.0, %v609
    %v611 = vrcp.pop %v565
    %v612 = vmul.f32 %v565, %v611
    %v613 = vsub.f32 1.0, %v612
    %v614 = vmul.f32 %v611, %v613
    %v615 = vadd.f32 %v611, %v614
    %vm616 = vweird.f32 %v565
    %vm617 = vweird.f32 %v611
    %vm618 = vmor %vm616, %vm617
    %v619 = vsel %vm618, %v611, %v615
    %v620 = vand.u32 2147483647, %v565
    %vm621 = vcmp.eq.f32.partialorder %v620, 8.507059e+37
    %v622 = vand.u32 %v565, 2147483648
    %v623 = vor.u32 1.1754944e-38, %v622
    %v624 = vsel %vm621, %v623, %v619
    %v625 = vmul.f32 1.0, %v624
    %v626 = vtanh.pop %v547
    %v627 = vtanh.pop %v549
    %v630 = vrot.slane %v481, 7
    %v631 = vrot.slane %v482, 7
    %632 = vrot.lane.b32.xlu0 %v630, 64
    %v633 = vpop.permute.xlu0 %632
    %634 = vrot.lane.b32.xlu0 %v631, 64
    %v635 = vpop.permute.xlu0 %634
    %v638 = vmul.f32 %v580, %v633
    %v639 = vmul.f32 %v610, %v635
    %642 = vrot.lane.b32.xlu0 %v626, 64
    %v643 = vpop.permute.xlu0 %642
    %644 = vrot.lane.b32.xlu0 %v627, 64
    %v645 = vpop.permute.xlu0 %644
    %v648 = vmul.f32 %v580, %v643
    %v649 = vmul.f32 %v610, %v645
    %652 = vrot.lane.b32.xlu0 %v648, 64
    %v653 = vpop.permute.xlu0 %652
    %654 = vrot.lane.b32.xlu0 %v649, 64
    %v655 = vpop.permute.xlu0 %654
    %v658 = vadd.f32 %v638, %v653
    %v659 = vadd.f32 %v639, %v655
    %v660 = vtanh.pop %v658
    %v661 = vtanh.pop %v659
    %664 = vrot.lane.b32.xlu0 %v660, 64
    %v665 = vpop.permute.xlu0 %664
    %666 = vrot.lane.b32.xlu0 %v661, 64
    %v667 = vpop.permute.xlu0 %666
    %v670 = vmul.f32 %v595, %v665
    %v671 = vmul.f32 %v625, %v667
    %674 = vrot.lane.b32.xlu0 %v658, 64
    %v675 = vpop.permute.xlu0 %674
    %676 = vrot.lane.b32.xlu0 %v659, 64
    %v677 = vpop.permute.xlu0 %676
    %v682 = vsel %vm274, %v675, %v630
    %v683 = vsel %vm275, %v677, %v631
    %v684 = vrot.slane %v486, 7
    %v685 = vrot.slane %v487, 7
    %v688 = vsel %vm274, %v670, %v684
    %v689 = vsel %vm275, %v671, %v685
    %v690 = vmul.f32 %v688, %v20
    %v691 = vmul.f32 %v689, %v21
    %v694 = vrot.slane %v688, 2
    %v695 = vrot.slane %v689, 1
    %v696 = vsel %vm293, %v695, %v694
    %v697 = vsel %vm106, %v696, 0
    %699 = vmatpush.msra.mxu0 0.0
    %700 = vmatpush.msra.mxu0 0.0
    %701 = vmatpush.msra.mxu0 0.0
    %702 = vmatpush.msra.mxu0 0.0
    %703 = vmatpush.msra.mxu0 0.0
    %704 = vmatpush.msra.mxu0 0.0
    %705 = vmatpush.msra.mxu0 0.0
    %706 = vmatpush.msra.mxu0 0.0
    %707 = vmatpush.msra.mxu0 %v44
    %708 = vmatpush.msra.mxu0 %v42
    %709 = vmatpush.msra.mxu0 %v40
    %710 = vmatpush.msra.mxu0 %v38
    %711 = vmatpush.msra.mxu0 %v36
    %712 = vmatpush.msra.mxu0 %v34
    %713 = vmatpush.msra.mxu0 %v32
    %714 = vmatpush.msra.mxu0 %v30
    %715 = vmatmul.f32.gmra.mxu0 %v697
    %v716 = vpop.f32.mrf.mxu0
    %v717 = vadd.f32 0.0, %v716
    %718 = vdwg.mxu0
    %719 = vmatpush.msra.mxu0 0.0
    %720 = vmatpush.msra.mxu0 0.0
    %721 = vmatpush.msra.mxu0 0.0
    %722 = vmatpush.msra.mxu0 0.0
    %723 = vmatpush.msra.mxu0 0.0
    %724 = vmatpush.msra.mxu0 0.0
    %725 = vmatpush.msra.mxu0 0.0
    %726 = vmatpush.msra.mxu0 0.0
    %727 = vmatpush.msra.mxu0 %v45
    %728 = vmatpush.msra.mxu0 %v43
    %729 = vmatpush.msra.mxu0 %v41
    %730 = vmatpush.msra.mxu0 %v39
    %731 = vmatpush.msra.mxu0 %v37
    %732 = vmatpush.msra.mxu0 %v35
    %733 = vmatpush.msra.mxu0 %v33
    %734 = vmatpush.msra.mxu0 %v31
    %735 = vmatmul.f32.gmra.mxu0 %v697
    %v736 = vpop.f32.mrf.mxu0
    %v737 = vadd.f32 0.0, %v736
    %738 = vdwg.mxu0
    %v741 = vrot.slane %v717, 5
    %v742 = vrot.slane %v737, 5
    %v743 = vrot.slane %v717, 6
    %v744 = vrot.slane %v737, 6
    %v749 = vadd.f32 %v78, %v741
    %v750 = vadd.f32 %v101, %v742
    %v751 = vadd.f32 %v81, %v743
    %v752 = vadd.f32 %v104, %v744
    %v753 = vxor.u32 %v749, 2147483648
    %v754 = vxor.u32 %v750, 2147483648
    %v755 = vxor.u32 %v751, 2147483648
    %v756 = vxor.u32 %v752, 2147483648
    %v757 = vmul.f32 %v753, 1.442695
    %v758 = vpow.pop %v757
    %v759 = vmul.f32 %v754, 1.442695
    %v760 = vpow.pop %v759
    %v761 = vmul.f32 %v755, 1.442695
    %v762 = vpow.pop %v761
    %v763 = vmul.f32 %v756, 1.442695
    %v764 = vpow.pop %v763
    %v765 = vadd.f32 %v758, 1.0
    %v766 = vadd.f32 %v760, 1.0
    %v767 = vadd.f32 %v762, 1.0
    %v768 = vadd.f32 %v764, 1.0
    %v769 = vrcp.pop %v765
    %v770 = vmul.f32 %v765, %v769
    %v771 = vsub.f32 1.0, %v770
    %v772 = vmul.f32 %v769, %v771
    %v773 = vadd.f32 %v769, %v772
    %vm774 = vweird.f32 %v765
    %vm775 = vweird.f32 %v769
    %vm776 = vmor %vm774, %vm775
    %v777 = vsel %vm776, %v769, %v773
    %v778 = vand.u32 2147483647, %v765
    %vm779 = vcmp.eq.f32.partialorder %v778, 8.507059e+37
    %v780 = vand.u32 %v765, 2147483648
    %v781 = vor.u32 1.1754944e-38, %v780
    %v782 = vsel %vm779, %v781, %v777
    %v783 = vmul.f32 1.0, %v782
    %v784 = vrcp.pop %v766
    %v785 = vmul.f32 %v766, %v784
    %v786 = vsub.f32 1.0, %v785
    %v787 = vmul.f32 %v784, %v786
    %v788 = vadd.f32 %v784, %v787
    %vm789 = vweird.f32 %v766
    %vm790 = vweird.f32 %v784
    %vm791 = vmor %vm789, %vm790
    %v792 = vsel %vm791, %v784, %v788
    %v793 = vand.u32 2147483647, %v766
    %vm794 = vcmp.eq.f32.partialorder %v793, 8.507059e+37
    %v795 = vand.u32 %v766, 2147483648
    %v796 = vor.u32 1.1754944e-38, %v795
    %v797 = vsel %vm794, %v796, %v792
    %v798 = vmul.f32 1.0, %v797
    %v799 = vrcp.pop %v767
    %v800 = vmul.f32 %v767, %v799
    %v801 = vsub.f32 1.0, %v800
    %v802 = vmul.f32 %v799, %v801
    %v803 = vadd.f32 %v799, %v802
    %vm804 = vweird.f32 %v767
    %vm805 = vweird.f32 %v799
    %vm806 = vmor %vm804, %vm805
    %v807 = vsel %vm806, %v799, %v803
    %v808 = vand.u32 2147483647, %v767
    %vm809 = vcmp.eq.f32.partialorder %v808, 8.507059e+37
    %v810 = vand.u32 %v767, 2147483648
    %v811 = vor.u32 1.1754944e-38, %v810
    %v812 = vsel %vm809, %v811, %v807
    %v813 = vmul.f32 1.0, %v812
    %v814 = vrcp.pop %v768
    %v815 = vmul.f32 %v768, %v814
    %v816 = vsub.f32 1.0, %v815
    %v817 = vmul.f32 %v814, %v816
    %v818 = vadd.f32 %v814, %v817
    %vm819 = vweird.f32 %v768
    %vm820 = vweird.f32 %v814
    %vm821 = vmor %vm819, %vm820
    %v822 = vsel %vm821, %v814, %v818
    %v823 = vand.u32 2147483647, %v768
    %vm824 = vcmp.eq.f32.partialorder %v823, 8.507059e+37
    %v825 = vand.u32 %v768, 2147483648
    %v826 = vor.u32 1.1754944e-38, %v825
    %v827 = vsel %vm824, %v826, %v822
    %v828 = vmul.f32 1.0, %v827
    %v829 = vtanh.pop %v750
    %v830 = vtanh.pop %v752
    %v833 = vrot.slane %v682, 7
    %v834 = vrot.slane %v683, 7
    %835 = vrot.lane.b32.xlu0 %v833, 64
    %v836 = vpop.permute.xlu0 %835
    %837 = vrot.lane.b32.xlu0 %v834, 64
    %v838 = vpop.permute.xlu0 %837
    %v841 = vmul.f32 %v783, %v836
    %v842 = vmul.f32 %v813, %v838
    %845 = vrot.lane.b32.xlu0 %v829, 64
    %v846 = vpop.permute.xlu0 %845
    %847 = vrot.lane.b32.xlu0 %v830, 64
    %v848 = vpop.permute.xlu0 %847
    %v851 = vmul.f32 %v783, %v846
    %v852 = vmul.f32 %v813, %v848
    %855 = vrot.lane.b32.xlu0 %v851, 64
    %v856 = vpop.permute.xlu0 %855
    %857 = vrot.lane.b32.xlu0 %v852, 64
    %v858 = vpop.permute.xlu0 %857
    %v861 = vadd.f32 %v841, %v856
    %v862 = vadd.f32 %v842, %v858
    %v863 = vtanh.pop %v861
    %v864 = vtanh.pop %v862
    %867 = vrot.lane.b32.xlu0 %v863, 64
    %v868 = vpop.permute.xlu0 %867
    %869 = vrot.lane.b32.xlu0 %v864, 64
    %v870 = vpop.permute.xlu0 %869
    %v873 = vmul.f32 %v798, %v868
    %v874 = vmul.f32 %v828, %v870
    %877 = vrot.lane.b32.xlu0 %v861, 64
    %v878 = vpop.permute.xlu0 %877
    %879 = vrot.lane.b32.xlu0 %v862, 64
    %v880 = vpop.permute.xlu0 %879
    %v885 = vsel %vm274, %v878, %v833
    %v886 = vsel %vm275, %v880, %v834
    %v887 = vrot.slane %v688, 7
    %v888 = vrot.slane %v689, 7
    %v891 = vsel %vm274, %v873, %v887
    %v892 = vsel %vm275, %v874, %v888
    %v893 = vmul.f32 %v891, %v20
    %v894 = vmul.f32 %v892, %v21
    %v897 = vrot.slane %v891, 3
    %v898 = vrot.slane %v892, 2
    %v899 = vsel %vm293, %v898, %v897
    %v900 = vsel %vm106, %v899, 0
    %902 = vmatpush.msra.mxu0 0.0
    %903 = vmatpush.msra.mxu0 0.0
    %904 = vmatpush.msra.mxu0 0.0
    %905 = vmatpush.msra.mxu0 0.0
    %906 = vmatpush.msra.mxu0 0.0
    %907 = vmatpush.msra.mxu0 0.0
    %908 = vmatpush.msra.mxu0 0.0
    %909 = vmatpush.msra.mxu0 0.0
    %910 = vmatpush.msra.mxu0 %v44
    %911 = vmatpush.msra.mxu0 %v42
    %912 = vmatpush.msra.mxu0 %v40
    %913 = vmatpush.msra.mxu0 %v38
    %914 = vmatpush.msra.mxu0 %v36
    %915 = vmatpush.msra.mxu0 %v34
    %916 = vmatpush.msra.mxu0 %v32
    %917 = vmatpush.msra.mxu0 %v30
    %918 = vmatmul.f32.gmra.mxu0 %v900
    %v919 = vpop.f32.mrf.mxu0
    %v920 = vadd.f32 0.0, %v919
    %921 = vdwg.mxu0
    %922 = vmatpush.msra.mxu0 0.0
    %923 = vmatpush.msra.mxu0 0.0
    %924 = vmatpush.msra.mxu0 0.0
    %925 = vmatpush.msra.mxu0 0.0
    %926 = vmatpush.msra.mxu0 0.0
    %927 = vmatpush.msra.mxu0 0.0
    %928 = vmatpush.msra.mxu0 0.0
    %929 = vmatpush.msra.mxu0 0.0
    %930 = vmatpush.msra.mxu0 %v45
    %931 = vmatpush.msra.mxu0 %v43
    %932 = vmatpush.msra.mxu0 %v41
    %933 = vmatpush.msra.mxu0 %v39
    %934 = vmatpush.msra.mxu0 %v37
    %935 = vmatpush.msra.mxu0 %v35
    %936 = vmatpush.msra.mxu0 %v33
    %937 = vmatpush.msra.mxu0 %v31
    %938 = vmatmul.f32.gmra.mxu0 %v900
    %v939 = vpop.f32.mrf.mxu0
    %v940 = vadd.f32 0.0, %v939
    %941 = vdwg.mxu0
    %v944 = vrot.slane %v920, 4
    %v945 = vrot.slane %v940, 4
    %v946 = vrot.slane %v920, 5
    %v947 = vrot.slane %v940, 5
    %v952 = vadd.f32 %v78, %v944
    %v953 = vadd.f32 %v101, %v945
    %v954 = vadd.f32 %v81, %v946
    %v955 = vadd.f32 %v104, %v947
    %v956 = vxor.u32 %v952, 2147483648
    %v957 = vxor.u32 %v953, 2147483648
    %v958 = vxor.u32 %v954, 2147483648
    %v959 = vxor.u32 %v955, 2147483648
    %v960 = vmul.f32 %v956, 1.442695
    %v961 = vpow.pop %v960
    %v962 = vmul.f32 %v957, 1.442695
    %v963 = vpow.pop %v962
    %v964 = vmul.f32 %v958, 1.442695
    %v965 = vpow.pop %v964
    %v966 = vmul.f32 %v959, 1.442695
    %v967 = vpow.pop %v966
    %v968 = vadd.f32 %v961, 1.0
    %v969 = vadd.f32 %v963, 1.0
    %v970 = vadd.f32 %v965, 1.0
    %v971 = vadd.f32 %v967, 1.0
    %v972 = vrcp.pop %v968
    %v973 = vmul.f32 %v968, %v972
    %v974 = vsub.f32 1.0, %v973
    %v975 = vmul.f32 %v972, %v974
    %v976 = vadd.f32 %v972, %v975
    %vm977 = vweird.f32 %v968
    %vm978 = vweird.f32 %v972
    %vm979 = vmor %vm977, %vm978
    %v980 = vsel %vm979, %v972, %v976
    %v981 = vand.u32 2147483647, %v968
    %vm982 = vcmp.eq.f32.partialorder %v981, 8.507059e+37
    %v983 = vand.u32 %v968, 2147483648
    %v984 = vor.u32 1.1754944e-38, %v983
    %v985 = vsel %vm982, %v984, %v980
    %v986 = vmul.f32 1.0, %v985
    %v987 = vrcp.pop %v969
    %v988 = vmul.f32 %v969, %v987
    %v989 = vsub.f32 1.0, %v988
    %v990 = vmul.f32 %v987, %v989
    %v991 = vadd.f32 %v987, %v990
    %vm992 = vweird.f32 %v969
    %vm993 = vweird.f32 %v987
    %vm994 = vmor %vm992, %vm993
    %v995 = vsel %vm994, %v987, %v991
    %v996 = vand.u32 2147483647, %v969
    %vm997 = vcmp.eq.f32.partialorder %v996, 8.507059e+37
    %v998 = vand.u32 %v969, 2147483648
    %v999 = vor.u32 1.1754944e-38, %v998
    %v1000 = vsel %vm997, %v999, %v995
    %v1001 = vmul.f32 1.0, %v1000
    %v1002 = vrcp.pop %v970
    %v1003 = vmul.f32 %v970, %v1002
    %v1004 = vsub.f32 1.0, %v1003
    %v1005 = vmul.f32 %v1002, %v1004
    %v1006 = vadd.f32 %v1002, %v1005
    %vm1007 = vweird.f32 %v970
    %vm1008 = vweird.f32 %v1002
    %vm1009 = vmor %vm1007, %vm1008
    %v1010 = vsel %vm1009, %v1002, %v1006
    %v1011 = vand.u32 2147483647, %v970
    %vm1012 = vcmp.eq.f32.partialorder %v1011, 8.507059e+37
    %v1013 = vand.u32 %v970, 2147483648
    %v1014 = vor.u32 1.1754944e-38, %v1013
    %v1015 = vsel %vm1012, %v1014, %v1010
    %v1016 = vmul.f32 1.0, %v1015
    %v1017 = vrcp.pop %v971
    %v1018 = vmul.f32 %v971, %v1017
    %v1019 = vsub.f32 1.0, %v1018
    %v1020 = vmul.f32 %v1017, %v1019
    %v1021 = vadd.f32 %v1017, %v1020
    %vm1022 = vweird.f32 %v971
    %vm1023 = vweird.f32 %v1017
    %vm1024 = vmor %vm1022, %vm1023
    %v1025 = vsel %vm1024, %v1017, %v1021
    %v1026 = vand.u32 2147483647, %v971
    %vm1027 = vcmp.eq.f32.partialorder %v1026, 8.507059e+37
    %v1028 = vand.u32 %v971, 2147483648
    %v1029 = vor.u32 1.1754944e-38, %v1028
    %v1030 = vsel %vm1027, %v1029, %v1025
    %v1031 = vmul.f32 1.0, %v1030
    %v1032 = vtanh.pop %v953
    %v1033 = vtanh.pop %v955
    %v1036 = vrot.slane %v885, 7
    %v1037 = vrot.slane %v886, 7
    %1038 = vrot.lane.b32.xlu0 %v1036, 64
    %v1039 = vpop.permute.xlu0 %1038
    %1040 = vrot.lane.b32.xlu0 %v1037, 64
    %v1041 = vpop.permute.xlu0 %1040
    %v1044 = vmul.f32 %v986, %v1039
    %v1045 = vmul.f32 %v1016, %v1041
    %1048 = vrot.lane.b32.xlu0 %v1032, 64
    %v1049 = vpop.permute.xlu0 %1048
    %1050 = vrot.lane.b32.xlu0 %v1033, 64
    %v1051 = vpop.permute.xlu0 %1050
    %v1054 = vmul.f32 %v986, %v1049
    %v1055 = vmul.f32 %v1016, %v1051
    %1058 = vrot.lane.b32.xlu0 %v1054, 64
    %v1059 = vpop.permute.xlu0 %1058
    %1060 = vrot.lane.b32.xlu0 %v1055, 64
    %v1061 = vpop.permute.xlu0 %1060
    %v1064 = vadd.f32 %v1044, %v1059
    %v1065 = vadd.f32 %v1045, %v1061
    %v1066 = vtanh.pop %v1064
    %v1067 = vtanh.pop %v1065
    %1070 = vrot.lane.b32.xlu0 %v1066, 64
    %v1071 = vpop.permute.xlu0 %1070
    %1072 = vrot.lane.b32.xlu0 %v1067, 64
    %v1073 = vpop.permute.xlu0 %1072
    %v1076 = vmul.f32 %v1001, %v1071
    %v1077 = vmul.f32 %v1031, %v1073
    %1080 = vrot.lane.b32.xlu0 %v1064, 64
    %v1081 = vpop.permute.xlu0 %1080
    %1082 = vrot.lane.b32.xlu0 %v1065, 64
    %v1083 = vpop.permute.xlu0 %1082
    %v1088 = vsel %vm274, %v1081, %v1036
    %v1089 = vsel %vm275, %v1083, %v1037
    %v1090 = vrot.slane %v891, 7
    %v1091 = vrot.slane %v892, 7
    %v1094 = vsel %vm274, %v1076, %v1090
    %v1095 = vsel %vm275, %v1077, %v1091
    %v1096 = vmul.f32 %v1094, %v20
    %v1097 = vmul.f32 %v1095, %v21
    %v1100 = vrot.slane %v1094, 4
    %v1101 = vrot.slane %v1095, 3
    %v1102 = vsel %vm293, %v1101, %v1100
    %v1103 = vsel %vm106, %v1102, 0
    %1105 = vmatpush.msra.mxu0 0.0
    %1106 = vmatpush.msra.mxu0 0.0
    %1107 = vmatpush.msra.mxu0 0.0
    %1108 = vmatpush.msra.mxu0 0.0
    %1109 = vmatpush.msra.mxu0 0.0
    %1110 = vmatpush.msra.mxu0 0.0
    %1111 = vmatpush.msra.mxu0 0.0
    %1112 = vmatpush.msra.mxu0 0.0
    %1113 = vmatpush.msra.mxu0 %v44
    %1114 = vmatpush.msra.mxu0 %v42
    %1115 = vmatpush.msra.mxu0 %v40
    %1116 = vmatpush.msra.mxu0 %v38
    %1117 = vmatpush.msra.mxu0 %v36
    %1118 = vmatpush.msra.mxu0 %v34
    %1119 = vmatpush.msra.mxu0 %v32
    %1120 = vmatpush.msra.mxu0 %v30
    %1121 = vmatmul.f32.gmra.mxu0 %v1103
    %v1122 = vpop.f32.mrf.mxu0
    %v1123 = vadd.f32 0.0, %v1122
    %1124 = vdwg.mxu0
    %1125 = vmatpush.msra.mxu0 0.0
    %1126 = vmatpush.msra.mxu0 0.0
    %1127 = vmatpush.msra.mxu0 0.0
    %1128 = vmatpush.msra.mxu0 0.0
    %1129 = vmatpush.msra.mxu0 0.0
    %1130 = vmatpush.msra.mxu0 0.0
    %1131 = vmatpush.msra.mxu0 0.0
    %1132 = vmatpush.msra.mxu0 0.0
    %1133 = vmatpush.msra.mxu0 %v45
    %1134 = vmatpush.msra.mxu0 %v43
    %1135 = vmatpush.msra.mxu0 %v41
    %1136 = vmatpush.msra.mxu0 %v39
    %1137 = vmatpush.msra.mxu0 %v37
    %1138 = vmatpush.msra.mxu0 %v35
    %1139 = vmatpush.msra.mxu0 %v33
    %1140 = vmatpush.msra.mxu0 %v31
    %1141 = vmatmul.f32.gmra.mxu0 %v1103
    %v1142 = vpop.f32.mrf.mxu0
    %v1143 = vadd.f32 0.0, %v1142
    %1144 = vdwg.mxu0
    %v1147 = vrot.slane %v1123, 3
    %v1148 = vrot.slane %v1143, 3
    %v1149 = vrot.slane %v1123, 4
    %v1150 = vrot.slane %v1143, 4
    %v1155 = vadd.f32 %v78, %v1147
    %v1156 = vadd.f32 %v101, %v1148
    %v1157 = vadd.f32 %v81, %v1149
    %v1158 = vadd.f32 %v104, %v1150
    %v1159 = vxor.u32 %v1155, 2147483648
    %v1160 = vxor.u32 %v1156, 2147483648
    %v1161 = vxor.u32 %v1157, 2147483648
    %v1162 = vxor.u32 %v1158, 2147483648
    %v1163 = vmul.f32 %v1159, 1.442695
    %v1164 = vpow.pop %v1163
    %v1165 = vmul.f32 %v1160, 1.442695
    %v1166 = vpow.pop %v1165
    %v1167 = vmul.f32 %v1161, 1.442695
    %v1168 = vpow.pop %v1167
    %v1169 = vmul.f32 %v1162, 1.442695
    %v1170 = vpow.pop %v1169
    %v1171 = vadd.f32 %v1164, 1.0
    %v1172 = vadd.f32 %v1166, 1.0
    %v1173 = vadd.f32 %v1168, 1.0
    %v1174 = vadd.f32 %v1170, 1.0
    %v1175 = vrcp.pop %v1171
    %v1176 = vmul.f32 %v1171, %v1175
    %v1177 = vsub.f32 1.0, %v1176
    %v1178 = vmul.f32 %v1175, %v1177
    %v1179 = vadd.f32 %v1175, %v1178
    %vm1180 = vweird.f32 %v1171
    %vm1181 = vweird.f32 %v1175
    %vm1182 = vmor %vm1180, %vm1181
    %v1183 = vsel %vm1182, %v1175, %v1179
    %v1184 = vand.u32 2147483647, %v1171
    %vm1185 = vcmp.eq.f32.partialorder %v1184, 8.507059e+37
    %v1186 = vand.u32 %v1171, 2147483648
    %v1187 = vor.u32 1.1754944e-38, %v1186
    %v1188 = vsel %vm1185, %v1187, %v1183
    %v1189 = vmul.f32 1.0, %v1188
    %v1190 = vrcp.pop %v1172
    %v1191 = vmul.f32 %v1172, %v1190
    %v1192 = vsub.f32 1.0, %v1191
    %v1193 = vmul.f32 %v1190, %v1192
    %v1194 = vadd.f32 %v1190, %v1193
    %vm1195 = vweird.f32 %v1172
    %vm1196 = vweird.f32 %v1190
    %vm1197 = vmor %vm1195, %vm1196
    %v1198 = vsel %vm1197, %v1190, %v1194
    %v1199 = vand.u32 2147483647, %v1172
    %vm1200 = vcmp.eq.f32.partialorder %v1199, 8.507059e+37
    %v1201 = vand.u32 %v1172, 2147483648
    %v1202 = vor.u32 1.1754944e-38, %v1201
    %v1203 = vsel %vm1200, %v1202, %v1198
    %v1204 = vmul.f32 1.0, %v1203
    %v1205 = vrcp.pop %v1173
    %v1206 = vmul.f32 %v1173, %v1205
    %v1207 = vsub.f32 1.0, %v1206
    %v1208 = vmul.f32 %v1205, %v1207
    %v1209 = vadd.f32 %v1205, %v1208
    %vm1210 = vweird.f32 %v1173
    %vm1211 = vweird.f32 %v1205
    %vm1212 = vmor %vm1210, %vm1211
    %v1213 = vsel %vm1212, %v1205, %v1209
    %v1214 = vand.u32 2147483647, %v1173
    %vm1215 = vcmp.eq.f32.partialorder %v1214, 8.507059e+37
    %v1216 = vand.u32 %v1173, 2147483648
    %v1217 = vor.u32 1.1754944e-38, %v1216
    %v1218 = vsel %vm1215, %v1217, %v1213
    %v1219 = vmul.f32 1.0, %v1218
    %v1220 = vrcp.pop %v1174
    %v1221 = vmul.f32 %v1174, %v1220
    %v1222 = vsub.f32 1.0, %v1221
    %v1223 = vmul.f32 %v1220, %v1222
    %v1224 = vadd.f32 %v1220, %v1223
    %vm1225 = vweird.f32 %v1174
    %vm1226 = vweird.f32 %v1220
    %vm1227 = vmor %vm1225, %vm1226
    %v1228 = vsel %vm1227, %v1220, %v1224
    %v1229 = vand.u32 2147483647, %v1174
    %vm1230 = vcmp.eq.f32.partialorder %v1229, 8.507059e+37
    %v1231 = vand.u32 %v1174, 2147483648
    %v1232 = vor.u32 1.1754944e-38, %v1231
    %v1233 = vsel %vm1230, %v1232, %v1228
    %v1234 = vmul.f32 1.0, %v1233
    %v1235 = vtanh.pop %v1156
    %v1236 = vtanh.pop %v1158
    %v1239 = vrot.slane %v1088, 7
    %v1240 = vrot.slane %v1089, 7
    %1241 = vrot.lane.b32.xlu0 %v1239, 64
    %v1242 = vpop.permute.xlu0 %1241
    %1243 = vrot.lane.b32.xlu0 %v1240, 64
    %v1244 = vpop.permute.xlu0 %1243
    %v1247 = vmul.f32 %v1189, %v1242
    %v1248 = vmul.f32 %v1219, %v1244
    %1251 = vrot.lane.b32.xlu0 %v1235, 64
    %v1252 = vpop.permute.xlu0 %1251
    %1253 = vrot.lane.b32.xlu0 %v1236, 64
    %v1254 = vpop.permute.xlu0 %1253
    %v1257 = vmul.f32 %v1189, %v1252
    %v1258 = vmul.f32 %v1219, %v1254
    %1261 = vrot.lane.b32.xlu0 %v1257, 64
    %v1262 = vpop.permute.xlu0 %1261
    %1263 = vrot.lane.b32.xlu0 %v1258, 64
    %v1264 = vpop.permute.xlu0 %1263
    %v1267 = vadd.f32 %v1247, %v1262
    %v1268 = vadd.f32 %v1248, %v1264
    %v1269 = vtanh.pop %v1267
    %v1270 = vtanh.pop %v1268
    %1273 = vrot.lane.b32.xlu0 %v1269, 64
    %v1274 = vpop.permute.xlu0 %1273
    %1275 = vrot.lane.b32.xlu0 %v1270, 64
    %v1276 = vpop.permute.xlu0 %1275
    %v1279 = vmul.f32 %v1204, %v1274
    %v1280 = vmul.f32 %v1234, %v1276
    %1283 = vrot.lane.b32.xlu0 %v1267, 64
    %v1284 = vpop.permute.xlu0 %1283
    %1285 = vrot.lane.b32.xlu0 %v1268, 64
    %v1286 = vpop.permute.xlu0 %1285
    %v1291 = vsel %vm274, %v1284, %v1239
    %v1292 = vsel %vm275, %v1286, %v1240
    %v1293 = vrot.slane %v1094, 7
    %v1294 = vrot.slane %v1095, 7
    %v1297 = vsel %vm274, %v1279, %v1293
    %v1298 = vsel %vm275, %v1280, %v1294
    %v1299 = vmul.f32 %v1297, %v20
    %v1300 = vmul.f32 %v1298, %v21
    %v1303 = vrot.slane %v1297, 5
    %v1304 = vrot.slane %v1298, 4
    %v1305 = vsel %vm293, %v1304, %v1303
    %v1306 = vsel %vm106, %v1305, 0
    %1308 = vmatpush.msra.mxu0 0.0
    %1309 = vmatpush.msra.mxu0 0.0
    %1310 = vmatpush.msra.mxu0 0.0
    %1311 = vmatpush.msra.mxu0 0.0
    %1312 = vmatpush.msra.mxu0 0.0
    %1313 = vmatpush.msra.mxu0 0.0
    %1314 = vmatpush.msra.mxu0 0.0
    %1315 = vmatpush.msra.mxu0 0.0
    %1316 = vmatpush.msra.mxu0 %v44
    %1317 = vmatpush.msra.mxu0 %v42
    %1318 = vmatpush.msra.mxu0 %v40
    %1319 = vmatpush.msra.mxu0 %v38
    %1320 = vmatpush.msra.mxu0 %v36
    %1321 = vmatpush.msra.mxu0 %v34
    %1322 = vmatpush.msra.mxu0 %v32
    %1323 = vmatpush.msra.mxu0 %v30
    %1324 = vmatmul.f32.gmra.mxu0 %v1306
    %v1325 = vpop.f32.mrf.mxu0
    %v1326 = vadd.f32 0.0, %v1325
    %1327 = vdwg.mxu0
    %1328 = vmatpush.msra.mxu0 0.0
    %1329 = vmatpush.msra.mxu0 0.0
    %1330 = vmatpush.msra.mxu0 0.0
    %1331 = vmatpush.msra.mxu0 0.0
    %1332 = vmatpush.msra.mxu0 0.0
    %1333 = vmatpush.msra.mxu0 0.0
    %1334 = vmatpush.msra.mxu0 0.0
    %1335 = vmatpush.msra.mxu0 0.0
    %1336 = vmatpush.msra.mxu0 %v45
    %1337 = vmatpush.msra.mxu0 %v43
    %1338 = vmatpush.msra.mxu0 %v41
    %1339 = vmatpush.msra.mxu0 %v39
    %1340 = vmatpush.msra.mxu0 %v37
    %1341 = vmatpush.msra.mxu0 %v35
    %1342 = vmatpush.msra.mxu0 %v33
    %1343 = vmatpush.msra.mxu0 %v31
    %1344 = vmatmul.f32.gmra.mxu0 %v1306
    %v1345 = vpop.f32.mrf.mxu0
    %v1346 = vadd.f32 0.0, %v1345
    %1347 = vdwg.mxu0
    %v1350 = vrot.slane %v1326, 2
    %v1351 = vrot.slane %v1346, 2
    %v1352 = vrot.slane %v1326, 3
    %v1353 = vrot.slane %v1346, 3
    %v1358 = vadd.f32 %v78, %v1350
    %v1359 = vadd.f32 %v101, %v1351
    %v1360 = vadd.f32 %v81, %v1352
    %v1361 = vadd.f32 %v104, %v1353
    %v1362 = vxor.u32 %v1358, 2147483648
    %v1363 = vxor.u32 %v1359, 2147483648
    %v1364 = vxor.u32 %v1360, 2147483648
    %v1365 = vxor.u32 %v1361, 2147483648
    %v1366 = vmul.f32 %v1362, 1.442695
    %v1367 = vpow.pop %v1366
    %v1368 = vmul.f32 %v1363, 1.442695
    %v1369 = vpow.pop %v1368
    %v1370 = vmul.f32 %v1364, 1.442695
    %v1371 = vpow.pop %v1370
    %v1372 = vmul.f32 %v1365, 1.442695
    %v1373 = vpow.pop %v1372
    %v1374 = vadd.f32 %v1367, 1.0
    %v1375 = vadd.f32 %v1369, 1.0
    %v1376 = vadd.f32 %v1371, 1.0
    %v1377 = vadd.f32 %v1373, 1.0
    %v1378 = vrcp.pop %v1374
    %v1379 = vmul.f32 %v1374, %v1378
    %v1380 = vsub.f32 1.0, %v1379
    %v1381 = vmul.f32 %v1378, %v1380
    %v1382 = vadd.f32 %v1378, %v1381
    %vm1383 = vweird.f32 %v1374
    %vm1384 = vweird.f32 %v1378
    %vm1385 = vmor %vm1383, %vm1384
    %v1386 = vsel %vm1385, %v1378, %v1382
    %v1387 = vand.u32 2147483647, %v1374
    %vm1388 = vcmp.eq.f32.partialorder %v1387, 8.507059e+37
    %v1389 = vand.u32 %v1374, 2147483648
    %v1390 = vor.u32 1.1754944e-38, %v1389
    %v1391 = vsel %vm1388, %v1390, %v1386
    %v1392 = vmul.f32 1.0, %v1391
    %v1393 = vrcp.pop %v1375
    %v1394 = vmul.f32 %v1375, %v1393
    %v1395 = vsub.f32 1.0, %v1394
    %v1396 = vmul.f32 %v1393, %v1395
    %v1397 = vadd.f32 %v1393, %v1396
    %vm1398 = vweird.f32 %v1375
    %vm1399 = vweird.f32 %v1393
    %vm1400 = vmor %vm1398, %vm1399
    %v1401 = vsel %vm1400, %v1393, %v1397
    %v1402 = vand.u32 2147483647, %v1375
    %vm1403 = vcmp.eq.f32.partialorder %v1402, 8.507059e+37
    %v1404 = vand.u32 %v1375, 2147483648
    %v1405 = vor.u32 1.1754944e-38, %v1404
    %v1406 = vsel %vm1403, %v1405, %v1401
    %v1407 = vmul.f32 1.0, %v1406
    %v1408 = vrcp.pop %v1376
    %v1409 = vmul.f32 %v1376, %v1408
    %v1410 = vsub.f32 1.0, %v1409
    %v1411 = vmul.f32 %v1408, %v1410
    %v1412 = vadd.f32 %v1408, %v1411
    %vm1413 = vweird.f32 %v1376
    %vm1414 = vweird.f32 %v1408
    %vm1415 = vmor %vm1413, %vm1414
    %v1416 = vsel %vm1415, %v1408, %v1412
    %v1417 = vand.u32 2147483647, %v1376
    %vm1418 = vcmp.eq.f32.partialorder %v1417, 8.507059e+37
    %v1419 = vand.u32 %v1376, 2147483648
    %v1420 = vor.u32 1.1754944e-38, %v1419
    %v1421 = vsel %vm1418, %v1420, %v1416
    %v1422 = vmul.f32 1.0, %v1421
    %v1423 = vrcp.pop %v1377
    %v1424 = vmul.f32 %v1377, %v1423
    %v1425 = vsub.f32 1.0, %v1424
    %v1426 = vmul.f32 %v1423, %v1425
    %v1427 = vadd.f32 %v1423, %v1426
    %vm1428 = vweird.f32 %v1377
    %vm1429 = vweird.f32 %v1423
    %vm1430 = vmor %vm1428, %vm1429
    %v1431 = vsel %vm1430, %v1423, %v1427
    %v1432 = vand.u32 2147483647, %v1377
    %vm1433 = vcmp.eq.f32.partialorder %v1432, 8.507059e+37
    %v1434 = vand.u32 %v1377, 2147483648
    %v1435 = vor.u32 1.1754944e-38, %v1434
    %v1436 = vsel %vm1433, %v1435, %v1431
    %v1437 = vmul.f32 1.0, %v1436
    %v1438 = vtanh.pop %v1359
    %v1439 = vtanh.pop %v1361
    %v1442 = vrot.slane %v1291, 7
    %v1443 = vrot.slane %v1292, 7
    %1444 = vrot.lane.b32.xlu0 %v1442, 64
    %v1445 = vpop.permute.xlu0 %1444
    %1446 = vrot.lane.b32.xlu0 %v1443, 64
    %v1447 = vpop.permute.xlu0 %1446
    %v1450 = vmul.f32 %v1392, %v1445
    %v1451 = vmul.f32 %v1422, %v1447
    %1454 = vrot.lane.b32.xlu0 %v1438, 64
    %v1455 = vpop.permute.xlu0 %1454
    %1456 = vrot.lane.b32.xlu0 %v1439, 64
    %v1457 = vpop.permute.xlu0 %1456
    %v1460 = vmul.f32 %v1392, %v1455
    %v1461 = vmul.f32 %v1422, %v1457
    %1464 = vrot.lane.b32.xlu0 %v1460, 64
    %v1465 = vpop.permute.xlu0 %1464
    %1466 = vrot.lane.b32.xlu0 %v1461, 64
    %v1467 = vpop.permute.xlu0 %1466
    %v1470 = vadd.f32 %v1450, %v1465
    %v1471 = vadd.f32 %v1451, %v1467
    %v1472 = vtanh.pop %v1470
    %v1473 = vtanh.pop %v1471
    %1476 = vrot.lane.b32.xlu0 %v1472, 64
    %v1477 = vpop.permute.xlu0 %1476
    %1478 = vrot.lane.b32.xlu0 %v1473, 64
    %v1479 = vpop.permute.xlu0 %1478
    %v1482 = vmul.f32 %v1407, %v1477
    %v1483 = vmul.f32 %v1437, %v1479
    %1486 = vrot.lane.b32.xlu0 %v1470, 64
    %v1487 = vpop.permute.xlu0 %1486
    %1488 = vrot.lane.b32.xlu0 %v1471, 64
    %v1489 = vpop.permute.xlu0 %1488
    %v1494 = vsel %vm274, %v1487, %v1442
    %v1495 = vsel %vm275, %v1489, %v1443
    %v1496 = vrot.slane %v1297, 7
    %v1497 = vrot.slane %v1298, 7
    %v1500 = vsel %vm274, %v1482, %v1496
    %v1501 = vsel %vm275, %v1483, %v1497
    %v1502 = vmul.f32 %v1500, %v20
    %v1503 = vmul.f32 %v1501, %v21
    %v1506 = vrot.slane %v1500, 6
    %v1507 = vrot.slane %v1501, 5
    %v1508 = vsel %vm293, %v1507, %v1506
    %v1509 = vsel %vm106, %v1508, 0
    %1511 = vmatpush.msra.mxu0 0.0
    %1512 = vmatpush.msra.mxu0 0.0
    %1513 = vmatpush.msra.mxu0 0.0
    %1514 = vmatpush.msra.mxu0 0.0
    %1515 = vmatpush.msra.mxu0 0.0
    %1516 = vmatpush.msra.mxu0 0.0
    %1517 = vmatpush.msra.mxu0 0.0
    %1518 = vmatpush.msra.mxu0 0.0
    %1519 = vmatpush.msra.mxu0 %v44
    %1520 = vmatpush.msra.mxu0 %v42
    %1521 = vmatpush.msra.mxu0 %v40
    %1522 = vmatpush.msra.mxu0 %v38
    %1523 = vmatpush.msra.mxu0 %v36
    %1524 = vmatpush.msra.mxu0 %v34
    %1525 = vmatpush.msra.mxu0 %v32
    %1526 = vmatpush.msra.mxu0 %v30
    %1527 = vmatmul.f32.gmra.mxu0 %v1509
    %v1528 = vpop.f32.mrf.mxu0
    %v1529 = vadd.f32 0.0, %v1528
    %1530 = vdwg.mxu0
    %1531 = vmatpush.msra.mxu0 0.0
    %1532 = vmatpush.msra.mxu0 0.0
    %1533 = vmatpush.msra.mxu0 0.0
    %1534 = vmatpush.msra.mxu0 0.0
    %1535 = vmatpush.msra.mxu0 0.0
    %1536 = vmatpush.msra.mxu0 0.0
    %1537 = vmatpush.msra.mxu0 0.0
    %1538 = vmatpush.msra.mxu0 0.0
    %1539 = vmatpush.msra.mxu0 %v45
    %1540 = vmatpush.msra.mxu0 %v43
    %1541 = vmatpush.msra.mxu0 %v41
    %1542 = vmatpush.msra.mxu0 %v39
    %1543 = vmatpush.msra.mxu0 %v37
    %1544 = vmatpush.msra.mxu0 %v35
    %1545 = vmatpush.msra.mxu0 %v33
    %1546 = vmatpush.msra.mxu0 %v31
    %1547 = vmatmul.f32.gmra.mxu0 %v1509
    %v1548 = vpop.f32.mrf.mxu0
    %v1549 = vadd.f32 0.0, %v1548
    %1550 = vdwg.mxu0
    %v1553 = vrot.slane %v1529, 1
    %v1554 = vrot.slane %v1549, 1
    %v1555 = vrot.slane %v1529, 2
    %v1556 = vrot.slane %v1549, 2
    %v1561 = vadd.f32 %v78, %v1553
    %v1562 = vadd.f32 %v101, %v1554
    %v1563 = vadd.f32 %v81, %v1555
    %v1564 = vadd.f32 %v104, %v1556
    %v1565 = vxor.u32 %v1561, 2147483648
    %v1566 = vxor.u32 %v1562, 2147483648
    %v1567 = vxor.u32 %v1563, 2147483648
    %v1568 = vxor.u32 %v1564, 2147483648
    %v1569 = vmul.f32 %v1565, 1.442695
    %v1570 = vpow.pop %v1569
    %v1571 = vmul.f32 %v1566, 1.442695
    %v1572 = vpow.pop %v1571
    %v1573 = vmul.f32 %v1567, 1.442695
    %v1574 = vpow.pop %v1573
    %v1575 = vmul.f32 %v1568, 1.442695
    %v1576 = vpow.pop %v1575
    %v1577 = vadd.f32 %v1570, 1.0
    %v1578 = vadd.f32 %v1572, 1.0
    %v1579 = vadd.f32 %v1574, 1.0
    %v1580 = vadd.f32 %v1576, 1.0
    %v1581 = vrcp.pop %v1577
    %v1582 = vmul.f32 %v1577, %v1581
    %v1583 = vsub.f32 1.0, %v1582
    %v1584 = vmul.f32 %v1581, %v1583
    %v1585 = vadd.f32 %v1581, %v1584
    %vm1586 = vweird.f32 %v1577
    %vm1587 = vweird.f32 %v1581
    %vm1588 = vmor %vm1586, %vm1587
    %v1589 = vsel %vm1588, %v1581, %v1585
    %v1590 = vand.u32 2147483647, %v1577
    %vm1591 = vcmp.eq.f32.partialorder %v1590, 8.507059e+37
    %v1592 = vand.u32 %v1577, 2147483648
    %v1593 = vor.u32 1.1754944e-38, %v1592
    %v1594 = vsel %vm1591, %v1593, %v1589
    %v1595 = vmul.f32 1.0, %v1594
    %v1596 = vrcp.pop %v1578
    %v1597 = vmul.f32 %v1578, %v1596
    %v1598 = vsub.f32 1.0, %v1597
    %v1599 = vmul.f32 %v1596, %v1598
    %v1600 = vadd.f32 %v1596, %v1599
    %vm1601 = vweird.f32 %v1578
    %vm1602 = vweird.f32 %v1596
    %vm1603 = vmor %vm1601, %vm1602
    %v1604 = vsel %vm1603, %v1596, %v1600
    %v1605 = vand.u32 2147483647, %v1578
    %vm1606 = vcmp.eq.f32.partialorder %v1605, 8.507059e+37
    %v1607 = vand.u32 %v1578, 2147483648
    %v1608 = vor.u32 1.1754944e-38, %v1607
    %v1609 = vsel %vm1606, %v1608, %v1604
    %v1610 = vmul.f32 1.0, %v1609
    %v1611 = vrcp.pop %v1579
    %v1612 = vmul.f32 %v1579, %v1611
    %v1613 = vsub.f32 1.0, %v1612
    %v1614 = vmul.f32 %v1611, %v1613
    %v1615 = vadd.f32 %v1611, %v1614
    %vm1616 = vweird.f32 %v1579
    %vm1617 = vweird.f32 %v1611
    %vm1618 = vmor %vm1616, %vm1617
    %v1619 = vsel %vm1618, %v1611, %v1615
    %v1620 = vand.u32 2147483647, %v1579
    %vm1621 = vcmp.eq.f32.partialorder %v1620, 8.507059e+37
    %v1622 = vand.u32 %v1579, 2147483648
    %v1623 = vor.u32 1.1754944e-38, %v1622
    %v1624 = vsel %vm1621, %v1623, %v1619
    %v1625 = vmul.f32 1.0, %v1624
    %v1626 = vrcp.pop %v1580
    %v1627 = vmul.f32 %v1580, %v1626
    %v1628 = vsub.f32 1.0, %v1627
    %v1629 = vmul.f32 %v1626, %v1628
    %v1630 = vadd.f32 %v1626, %v1629
    %vm1631 = vweird.f32 %v1580
    %vm1632 = vweird.f32 %v1626
    %vm1633 = vmor %vm1631, %vm1632
    %v1634 = vsel %vm1633, %v1626, %v1630
    %v1635 = vand.u32 2147483647, %v1580
    %vm1636 = vcmp.eq.f32.partialorder %v1635, 8.507059e+37
    %v1637 = vand.u32 %v1580, 2147483648
    %v1638 = vor.u32 1.1754944e-38, %v1637
    %v1639 = vsel %vm1636, %v1638, %v1634
    %v1640 = vmul.f32 1.0, %v1639
    %v1641 = vtanh.pop %v1562
    %v1642 = vtanh.pop %v1564
    %v1645 = vrot.slane %v1494, 7
    %v1646 = vrot.slane %v1495, 7
    %1647 = vrot.lane.b32.xlu0 %v1645, 64
    %v1648 = vpop.permute.xlu0 %1647
    %1649 = vrot.lane.b32.xlu0 %v1646, 64
    %v1650 = vpop.permute.xlu0 %1649
    %v1653 = vmul.f32 %v1595, %v1648
    %v1654 = vmul.f32 %v1625, %v1650
    %1657 = vrot.lane.b32.xlu0 %v1641, 64
    %v1658 = vpop.permute.xlu0 %1657
    %1659 = vrot.lane.b32.xlu0 %v1642, 64
    %v1660 = vpop.permute.xlu0 %1659
    %v1663 = vmul.f32 %v1595, %v1658
    %v1664 = vmul.f32 %v1625, %v1660
    %1667 = vrot.lane.b32.xlu0 %v1663, 64
    %v1668 = vpop.permute.xlu0 %1667
    %1669 = vrot.lane.b32.xlu0 %v1664, 64
    %v1670 = vpop.permute.xlu0 %1669
    %v1673 = vadd.f32 %v1653, %v1668
    %v1674 = vadd.f32 %v1654, %v1670
    %v1675 = vtanh.pop %v1673
    %v1676 = vtanh.pop %v1674
    %1679 = vrot.lane.b32.xlu0 %v1675, 64
    %v1680 = vpop.permute.xlu0 %1679
    %1681 = vrot.lane.b32.xlu0 %v1676, 64
    %v1682 = vpop.permute.xlu0 %1681
    %v1685 = vmul.f32 %v1610, %v1680
    %v1686 = vmul.f32 %v1640, %v1682
    %v1687 = vrot.slane %v1500, 7
    %v1688 = vrot.slane %v1501, 7
    %v1691 = vsel %vm274, %v1685, %v1687
    %v1692 = vsel %vm275, %v1686, %v1688
    %v1693 = vmul.f32 %v1691, %v20
    %v1694 = vmul.f32 %v1692, %v21
    %v1697 = vrot.slane %v289, 7
    %v1698 = vsel %vm293, %v1697, %v288
    %v1702 = vrot.slane %v1693, 7
    %v1703 = vrot.slane %v1694, 6
    %v1704 = vsel %vm293, %v1703, %v1702
    %v1706 = vsel %vm53, %v1698, %v1704
    %v1708 = vrot.slane %v1706, 1
    %v1712 = vrot.slane %v489, 7
    %vm1713 = vcmask 1042434
    %v1714 = vsel %vm1713, %v1712, %v488
    %v1718 = vrot.slane %v1502, 5
    %v1719 = vrot.slane %v1503, 4
    %v1720 = vsel %vm1713, %v1719, %v1718
    %v1722 = vsel %vm53, %v1714, %v1720
    %1724 = vst [vmem:[#allocation1] sm:$0xff] %v1722
    %s1725 = scalar_lea.vmem [#allocation1], 1
    %v1726 = vld [vmem:[%s1725] ss:$9 sm:$0xff]
    %s1727 = scalar_lea.vmem [#allocation1], 2
    %v1728 = vld [vmem:[%s1727] ss:$9 sm:$0xff]
    %v1731 = vrot.slane %v691, 7
    %vm1732 = vcmask 1043459
    %v1733 = vsel %vm1732, %v1731, %v690
    %v1737 = vrot.slane %v1299, 3
    %v1738 = vrot.slane %v1300, 2
    %v1739 = vsel %vm1732, %v1738, %v1737
    %v1741 = vsel %vm53, %v1733, %v1739
    %1743 = vst [vmem:[#allocation1] sm:$0xff] %v1741
    %s1744 = scalar_lea.vmem [#allocation1], 2
    %v1745 = vld [vmem:[%s1744] ss:$9 sm:$0xff]
    %s1746 = scalar_lea.vmem [#allocation1], 3
    %v1747 = vld [vmem:[%s1746] ss:$9 sm:$0xff]
    %v1750 = vrot.slane %v894, 7
    %vm1751 = vcmask 1044484
    %v1752 = vsel %vm1751, %v1750, %v893
    %v1756 = vrot.slane %v1096, 1
    %v1757 = vsel %vm1751, %v1097, %v1756
    %v1759 = vsel %vm53, %v1752, %v1757
    %1761 = vst [vmem:[#allocation1] sm:$0xff] %v1759
    %s1762 = scalar_lea.vmem [#allocation1], 3
    %v1763 = vld [vmem:[%s1762] ss:$9 sm:$0xff]
    %s1764 = scalar_lea.vmem [#allocation1], 4
    %v1765 = vld [vmem:[%s1764] ss:$9 sm:$0xff]
    %v1766 = vrot.slane %v1097, 7
    %vm1767 = vcmask 1045509
    %v1768 = vsel %vm1767, %v1766, %v1096
    %v1770 = vrot.slane %v893, 7
    %v1771 = vrot.slane %v894, 6
    %v1772 = vsel %vm1767, %v1771, %v1770
    %v1774 = vsel %vm53, %v1768, %v1772
    %1776 = vst [vmem:[#allocation1] sm:$0xff] %v1774
    %s1777 = scalar_lea.vmem [#allocation1], 4
    %v1778 = vld [vmem:[%s1777] ss:$9 sm:$0xff]
    %s1779 = scalar_lea.vmem [#allocation1], 5
    %v1780 = vld [vmem:[%s1779] ss:$9 sm:$0xff]
    %v1781 = vrot.slane %v1300, 7
    %vm1782 = vcmask 1046534
    %v1783 = vsel %vm1782, %v1781, %v1299
    %v1785 = vrot.slane %v690, 5
    %v1786 = vrot.slane %v691, 4
    %v1787 = vsel %vm1782, %v1786, %v1785
    %v1789 = vsel %vm53, %v1783, %v1787
    %1791 = vst [vmem:[#allocation1] sm:$0xff] %v1789
    %s1792 = scalar_lea.vmem [#allocation1], 5
    %v1793 = vld [vmem:[%s1792] ss:$9 sm:$0xff]
    %s1794 = scalar_lea.vmem [#allocation1], 6
    %v1795 = vld [vmem:[%s1794] ss:$9 sm:$0xff]
    %v1796 = vrot.slane %v1503, 7
    %vm1797 = vcmask 1047559
    %v1798 = vsel %vm1797, %v1796, %v1502
    %v1800 = vrot.slane %v488, 3
    %v1801 = vrot.slane %v489, 2
    %v1802 = vsel %vm1797, %v1801, %v1800
    %v1804 = vsel %vm53, %v1798, %v1802
    %1806 = vst [vmem:[#allocation1] sm:$0xff] %v1804
    %s1807 = scalar_lea.vmem [#allocation1], 6
    %v1808 = vld [vmem:[%s1807] ss:$9 sm:$0xff]
    %s1809 = scalar_lea.vmem [#allocation1], 7
    %v1810 = vld [vmem:[%s1809] ss:$9 sm:$0xff]
    %v1811 = vrot.slane %v1694, 7
    %v1814 = vrot.slane %v288, 1
    %v1817 = vsel %vm53, %v1693, %v1814
    %v1818 = vsel %vm53, %v1811, %v289
    %1821 = vst [vmem:[#allocation1] sm:$0xff] %v1817
    %s1822 = scalar_lea.vmem [#allocation1], 7
    %v1823 = vld [vmem:[%s1822] ss:$9 sm:$0xff]
    %1824 = vst [vmem:[#allocation1] sm:$0xff] %v1818
    %v1825 = vld [vmem:[#allocation1] ss:$9 sm:$0xff]
    %v1826 = vperm.slane %v1726, 0
    %v1827 = vperm.slane %v1728, 0
    %v1830 = vperm.slane %v1745, 0
    %v1831 = vperm.slane %v1747, 0
    %v1834 = vperm.slane %v1763, 0
    %v1835 = vperm.slane %v1765, 0
    %v1838 = vperm.slane %v1778, 0
    %v1839 = vperm.slane %v1780, 0
    %v1842 = vperm.slane %v1793, 0
    %v1843 = vperm.slane %v1795, 0
    %v1846 = vperm.slane %v1808, 0
    %v1847 = vperm.slane %v1810, 0
    %v1850 = vperm.slane %v1823, 0
    %v1851 = vperm.slane %v1825, 0
    %vm1854 = vcmask 1040384
    %v1855 = vsel %vm1854, %v1706, %v1826
    %v1856 = vsel %vm1854, %v1708, %v1827
    %vm1857 = vcmask 1041408
    %v1858 = vsel %vm1857, %v1855, %v1830
    %v1859 = vsel %vm1857, %v1856, %v1831
    %vm1860 = vcmask 1042432
    %v1861 = vsel %vm1860, %v1858, %v1834
    %v1862 = vsel %vm1860, %v1859, %v1835
    %vm1863 = vcmask 1043456
    %v1864 = vsel %vm1863, %v1861, %v1838
    %v1865 = vsel %vm1863, %v1862, %v1839
    %vm1866 = vcmask 1044480
    %v1867 = vsel %vm1866, %v1864, %v1842
    %v1868 = vsel %vm1866, %v1865, %v1843
    %vm1869 = vcmask 1045504
    %v1870 = vsel %vm1869, %v1867, %v1846
    %v1871 = vsel %vm1869, %v1868, %v1847
    %vm1872 = vcmask 1046528
    %v1873 = vsel %vm1872, %v1870, %v1850
    %v1874 = vsel %vm1872, %v1871, %v1851
    %v1875 = vld [vmem:[%s3] sm:$0xff]
    %v1876 = vld [vmem:[%s3 + $0x8] sm:$0xff]
    %v1877 = vld [vmem:[%s3 + $0x10] sm:$0xff]
    %v1878 = vld [vmem:[%s3 + $0x18] sm:$0xff]
    %v1879 = vld [vmem:[%s3 + $0x20] sm:$0xff]
    %v1880 = vld [vmem:[%s3 + $0x28] sm:$0xff]
    %v1881 = vld [vmem:[%s3 + $0x30] sm:$0xff]
    %v1882 = vld [vmem:[%s3 + $0x38] sm:$0xff]
    %v1883 = vld [vmem:[%s3 + $0x40] sm:$0x1]
    %v1885 = vsel %vm106, %v1873, 0
    %v1888 = vsel %vm106, %v1874, 0
    %1890 = vmatpush.msra.mxu0 0.0
    %1891 = vmatpush.msra.mxu0 0.0
    %1892 = vmatpush.msra.mxu0 0.0
    %1893 = vmatpush.msra.mxu0 0.0
    %1894 = vmatpush.msra.mxu0 0.0
    %1895 = vmatpush.msra.mxu0 0.0
    %1896 = vmatpush.msra.mxu0 0.0
    %1897 = vmatpush.msra.mxu0 0.0
    %1898 = vmatpush.msra.mxu0 %v1882
    %1899 = vmatpush.msra.mxu0 %v1881
    %1900 = vmatpush.msra.mxu0 %v1880
    %1901 = vmatpush.msra.mxu0 %v1879
    %1902 = vmatpush.msra.mxu0 %v1878
    %1903 = vmatpush.msra.mxu0 %v1877
    %1904 = vmatpush.msra.mxu0 %v1876
    %1905 = vmatpush.msra.mxu0 %v1875
    %1906 = vmatmul.f32.gmra.mxu0 %v1885
    %v1907 = vpop.f32.mrf.mxu0
    %v1908 = vadd.f32 0.0, %v1907
    %1909 = vmatmul.f32.gmra.mxu0 %v1888
    %v1910 = vpop.f32.mrf.mxu0
    %v1911 = vadd.f32 0.0, %v1910
    %1912 = vdwg.mxu0
    %v1913 = vsub.f32 %v20, 1.0
    %v1914 = vsub.f32 %v21, 1.0
    %v1915 = vmul.f32 %v1913, 1e+30
    %v1916 = vmul.f32 %v1914, 1e+30
    %1918 = vset.pattern.permute.xlu0 0
    %1919 = vperm.xlu0 %1918, %v1915
    %v1920 = vpop.permute.xlu0 %1919
    %1923 = vset.pattern.permute.xlu0 0
    %1924 = vperm.xlu0 %1923, %v1916
    %v1925 = vpop.permute.xlu0 %1924
    %v1927 = vadd.f32 %v1908, %v1920
    %v1928 = vadd.f32 %v1911, %v1925
    %vm1929 = vcmask 31744
    %v1930 = vsel %vm1929, %v1927, -inf
    %v1931 = vrot.slane %v1930, 4
    %v1932 = vmax.f32 %v1930, %v1931
    %v1933 = vrot.slane %v1932, 2
    %v1934 = vmax.f32 %v1932, %v1933
    %v1935 = vrot.slane %v1934, 1
    %v1936 = vmax.f32 %v1934, %v1935
    %v1937 = vsel %vm1929, %v1928, -inf
    %v1938 = vrot.slane %v1937, 4
    %v1939 = vmax.f32 %v1937, %v1938
    %v1940 = vrot.slane %v1939, 2
    %v1941 = vmax.f32 %v1939, %v1940
    %v1942 = vrot.slane %v1941, 1
    %v1943 = vmax.f32 %v1941, %v1942
    %v1944 = vsub.f32 %v1927, %v1936
    %v1945 = vsub.f32 %v1928, %v1943
    %v1946 = vmul.f32 %v1944, 1.442695
    %v1947 = vpow.pop %v1946
    %v1948 = vmul.f32 %v1945, 1.442695
    %v1949 = vpow.pop %v1948
    %v1950 = vsel %vm1929, %v1947, 0.0
    %v1951 = vrot.slane %v1950, 4
    %v1952 = vadd.f32 %v1950, %v1951
    %v1953 = vrot.slane %v1952, 2
    %v1954 = vadd.f32 %v1952, %v1953
    %v1955 = vrot.slane %v1954, 1
    %v1956 = vadd.f32 %v1954, %v1955
    %v1957 = vsel %vm1929, %v1949, 0.0
    %v1958 = vrot.slane %v1957, 4
    %v1959 = vadd.f32 %v1957, %v1958
    %v1960 = vrot.slane %v1959, 2
    %v1961 = vadd.f32 %v1959, %v1960
    %v1962 = vrot.slane %v1961, 1
    %v1963 = vadd.f32 %v1961, %v1962
    %v1964 = vrcp.pop %v1956
    %v1965 = vrcp.pop %v1963
    %v1966 = vmul.f32 %v1947, %v1964
    %v1967 = vmul.f32 %v1949, %v1965
    %1969 = vset.pattern.permute.xlu0 4
    %1970 = vperm.xlu0 %1969, %v1908
    %v1971 = vpop.permute.xlu0 %1970
    %1974 = vset.pattern.permute.xlu0 4
    %1975 = vperm.xlu0 %1974, %v1911
    %v1976 = vpop.permute.xlu0 %1975
    %v1978 = vmul.f32 %v1966, %v1971
    %v1979 = vmul.f32 %v1967, %v1976
    %v1980 = vsel %vm1929, %v1978, 0.0
    %v1981 = vrot.slane %v1980, 4
    %v1982 = vadd.f32 %v1980, %v1981
    %v1983 = vrot.slane %v1982, 2
    %v1984 = vadd.f32 %v1982, %v1983
    %v1985 = vrot.slane %v1984, 1
    %v1986 = vadd.f32 %v1984, %v1985
    %v1987 = vsel %vm1929, %v1979, 0.0
    %v1988 = vrot.slane %v1987, 4
    %v1989 = vadd.f32 %v1987, %v1988
    %v1990 = vrot.slane %v1989, 2
    %v1991 = vadd.f32 %v1989, %v1990
    %v1992 = vrot.slane %v1991, 1
    %v1993 = vadd.f32 %v1991, %v1992
    %1995 = vrot.lane.b32.xlu0 %v1883, 124
    %v1996 = vpop.permute.xlu0 %1995
    %s1997 = vtos %v1996
    %v1998 = vstv %s1997
    %v2000 = vadd.f32 %v1986, %v1998
    %v2001 = vadd.f32 %v1993, %v1998
    %v2004 = vsel %vm293, %v2001, %v2000
    %vm2006 = vcmask 25600
    %v2007 = vsel %vm2006, %v2004, -inf
    %2008 = vmax.xlane.f32.xlu0 %v2007
    %v2009 = vpop.xlane.xlu0 %2008
    %v2011 = vrot.slane %v2009, 1
    %v2014 = vsub.f32 %v2000, %v2009
    %v2015 = vsub.f32 %v2001, %v2011
    %v2016 = vmul.f32 %v2014, 1.442695
    %v2017 = vpow.pop %v2016
    %v2018 = vmul.f32 %v2015, 1.442695
    %v2019 = vpow.pop %v2018
    %v2022 = vrot.slane %v2019, 7
    %v2023 = vsel %vm293, %v2022, %v2017
    %v2025 = vsel %vm2006, %v2023, 0.0
    %2026 = vadd.xlane.f32.xlu0 %v2025
    %v2027 = vpop.xlane.xlu0 %2026
    %v2028 = vlog2.pop %v2027
    %v2029 = vmul.f32 %v2028, 0.6931472
    %v2031 = vrot.slane %v2029, 1
    %v2034 = vsub.f32 %v2014, %v2029
    %v2035 = vsub.f32 %v2015, %v2031
    %v2038 = vrot.slane %v2035, 7
    %v2039 = vsel %vm293, %v2038, %v2034
    %2041 = vst.msk [vmem:[#allocation2] sm:$0x3] %vm2006, %v2039
    // Predicated region
    $region18: #{net_lstm_forward.1} parent=1 // pred_check
      _
    $region19: #{net_lstm_forward.1} parent=1 // pred_check_branch
      %2043 = sbr.rel (0) target = $region21
    $region20: #{net_lstm_forward.1} parent=1 // pred_region
      %2045 = vsyncadd [#allocation3], 0
      %s2047 = sshll.u32 [#allocation2], 4
      %s2048 = int_to_ptr.vmem [resolvable:$true] %s2047
      %s2049 = sshll.u32 %s4, 4
      %s2050 = int_to_ptr.hbm [resolvable:$true] %s2049
      %2052 = dma.vmem_to_hbm [thread:$0]  %s2048, 32, %s2050, [#allocation3]
    $region21: #{net_lstm_forward.1} parent=1 // pred_fallthru
      _
    // Predicated region
    $region22: #{net_lstm_forward.1} parent=1 // pred_check
      _
    $region23: #{net_lstm_forward.1} parent=1 // pred_check_branch
      %2054 = sbr.rel (0) target = $region25
    $region24: #{net_lstm_forward.1} parent=1 // pred_region
      %2056 = dma.done [#allocation3], 32
    $region25: #{net_lstm_forward.1} parent=1 // pred_fallthru
      _
    %2057 = vsyncpa [#allocation3], 1

</llo_original>
